<compile_context>
chip_gen: v6e
topology: v6e:2x2x1
jax: 0.10.0
libtpu: 0.0.40
codegen_flags: <defaults>
</compile_context>

<pallas_src>
import functools
import math

import jax
import jax.numpy as jnp
from jax.experimental import pallas as pl
from jax.experimental.pallas import tpu as pltpu


def _self_attention_kernel(x_ref, mask_ref, w_ref, b_ref, o_ref, qkv_ref, *,
                           seq_len, hidden, num_heads, head_dim, group_heads):
    """One (batch, head-group) grid step."""
    g = pl.program_id(1)

    # --- fused QKV projection, once per batch element (g == 0) ----------------
    # Wide N=3H GEMM fills the MXU; weight block index is constant -> single DMA.
    @pl.when(g == 0)
    def _project():
        x = x_ref[0]                                            # [S, H]
        qkv = jnp.dot(x, w_ref[...], preferred_element_type=jnp.float32)
        qkv = qkv + b_ref[...]                                  # [S, 3H] f32
        qkv_ref[...] = qkv.astype(qkv_ref.dtype)

    # --- per-group q/k/v slices (128-lane aligned offsets) --------------------
    gw = group_heads * head_dim
    num_groups = num_heads // group_heads
    if num_groups == 1:
        q_off, k_off, v_off = 0, hidden, 2 * hidden             # static offsets
    else:
        off = pl.multiple_of(g * gw, gw)                        # gw % 128 == 0 here
        q_off, k_off, v_off = off, hidden + off, 2 * hidden + off

    q = qkv_ref[:, pl.ds(q_off, gw)]                            # [S, gw]
    k = qkv_ref[:, pl.ds(k_off, gw)]
    v = qkv_ref[:, pl.ds(v_off, gw)]

    # Heads-leading layout for batched MXU matmuls.
    qh = jnp.transpose(q.reshape(seq_len, group_heads, head_dim), (1, 0, 2))  # [G,S,hd]
    kh = jnp.transpose(k.reshape(seq_len, group_heads, head_dim), (1, 0, 2))
    vh = jnp.transpose(v.reshape(seq_len, group_heads, head_dim), (1, 0, 2))

    # scores = (q / sqrt(hd)) @ k^T + mask   (scale already folded into Q weights)
    s = jnp.einsum("gqd,gkd->gqk", qh, kh,
                   preferred_element_type=jnp.float32)          # [G, S, S] f32
    s = s + mask_ref[...].astype(jnp.float32)                   # [1,1,S] broadcast

    # Numerically stable softmax; normalization deferred past the PV matmul so
    # no [S,S] probs tensor is materialized.
    m = jnp.max(s, axis=-1, keepdims=True)
    e = jnp.exp(s - m)
    denom = jnp.sum(e, axis=-1, keepdims=True)                  # [G, S, 1]

    # Dropout on attention probs: eval mode -> identity.
    # TODO(synk): training-mode dropout via pltpu.prng_seed / prng_random_bits.

    ctx = jnp.einsum("gqk,gkd->gqd", e.astype(qkv_ref.dtype), vh,
                     preferred_element_type=jnp.float32)        # [G, S, hd] f32
    ctx = ctx * pl.reciprocal(denom, approx=True)               # EUP reciprocal

    # Direct store into [B, S, H] output == permute(0,2,1,3).reshape(B,S,H).
    o_ref[0] = (jnp.transpose(ctx, (1, 0, 2))
                .reshape(seq_len, gw).astype(o_ref.dtype))


def bert_self_attention(hidden_states, attention_mask, wq, bq, wk, bk, wv, bv,
                        *, num_attention_heads, matmul_dtype=jnp.bfloat16):
    """BERTSelfAttention forward.

    hidden_states:  [B, S, H]
    attention_mask: [B, 1, 1, S] (or [B, S] / [B, 1, S]) additive mask
    wq/wk/wv:       [H, H] PyTorch nn.Linear weights (out, in);  bq/bk/bv: [H]
    """
    B, S, H = hidden_states.shape
    nh = num_attention_heads
    if H % nh != 0:
        raise ValueError(f"hidden size {H} not a multiple of num heads {nh}")
    hd = H // nh
    scale = 1.0 / math.sqrt(hd)

    # Head-group size: smallest divisor G of nh with (G*hd) % 128 == 0 so q/k/v
    # slices and the output block are whole 128-lane multiples; fall back to all
    # heads in one group (block width == H, always legal) for small configs.
    G = nh
    for cand in range(1, nh + 1):
        if nh % cand == 0 and (cand * hd) % 128 == 0:
            G = cand
            break
    num_groups = nh // G

    f32 = jnp.float32
    # Fused projection weight [H, 3H] = [Wq^T*scale | Wk^T | Wv^T]; folding the
    # 1/sqrt(hd) scale into the Q columns (and bias) removes all in-kernel scaling.
    w_full = jnp.concatenate([wq.astype(f32).T * scale,
                              wk.astype(f32).T,
                              wv.astype(f32).T], axis=1)         # [H, 3H]
    b_full = jnp.concatenate([bq.astype(f32) * scale,
                              bk.astype(f32),
                              bv.astype(f32)]).reshape(1, 3 * H)  # [1, 3H] (f32)

    x_in = hidden_states
    compute_dtype = hidden_states.dtype
    if matmul_dtype is not None:
        compute_dtype = matmul_dtype
        x_in = x_in.astype(matmul_dtype)
        w_full = w_full.astype(matmul_dtype)

    if attention_mask.size != B * S:
        # TODO(synk): support full [B,1,S,S] masks with a (1,S,S) mask block.
        raise ValueError("only broadcast additive masks ([B,1,1,S]/[B,S]) are supported")
    mask = attention_mask.reshape(B, 1, S).astype(jnp.float32)

    cost = pl.CostEstimate(
        flops=int(6 * B * S * H * H + 4 * B * S * S * H),
        transcendentals=int(B * nh * S * S + B * nh * S),
        bytes_accessed=int(
            B * S * H * jnp.dtype(x_in.dtype).itemsize          # hidden states
            + 3 * H * H * jnp.dtype(w_full.dtype).itemsize      # fused weight (once)
            + 3 * H * 4 + B * S * 4                             # bias + mask
            + B * S * H * jnp.dtype(hidden_states.dtype).itemsize),  # output
    )

    kernel = functools.partial(_self_attention_kernel, seq_len=S, hidden=H,
                               num_heads=nh, head_dim=hd, group_heads=G)

    out = pl.pallas_call(
        kernel,
        out_shape=jax.ShapeDtypeStruct((B, S, H), hidden_states.dtype),
        grid_spec=pltpu.PrefetchScalarGridSpec(
            num_scalar_prefetch=0,
            grid=(B, num_groups),
            in_specs=[
                pl.BlockSpec((1, S, H), lambda b, g: (b, 0, 0)),      # x (per batch)
                pl.BlockSpec((1, 1, S), lambda b, g: (b, 0, 0)),      # additive mask
                pl.BlockSpec((H, 3 * H), lambda b, g: (0, 0)),        # fused W (DMA once)
                pl.BlockSpec((1, 3 * H), lambda b, g: (0, 0)),        # fused bias
            ],
            out_specs=pl.BlockSpec((1, S, G * hd), lambda b, g: (b, 0, g)),
            scratch_shapes=[pltpu.VMEM((S, 3 * H), compute_dtype)],   # per-batch QKV
        ),
        compiler_params=pltpu.CompilerParams(
            # g-axis carries the QKV scratch across head groups -> "arbitrary";
            # batch axis shards across TensorCores.
            dimension_semantics=("parallel", "arbitrary"),
            vmem_limit_bytes=64 * 1024 * 1024,
        ),
        cost_estimate=cost,
    )(x_in, mask, w_full, b_full)
    return out


def reference(hidden_states, attention_mask, wq, bq, wk, bk, wv, bv, num_heads):
    B, S, H = hidden_states.shape
    hd = H // num_heads

    def proj(w, b):
        y = jnp.einsum("bsh,oh->bso", hidden_states, w) + b
        return jnp.transpose(y.reshape(B, S, num_heads, hd), (0, 2, 1, 3))

    q = proj(wq, bq)
    k = proj(wk, bk)
    v = proj(wv, bv)
    scores = jnp.einsum("bhqd,bhkd->bhqk", q, k) / math.sqrt(hd)
    scores = scores + attention_mask
    probs = jax.nn.softmax(scores, axis=-1)
    ctx = jnp.einsum("bhqk,bhkd->bhqd", probs, v)
    return jnp.transpose(ctx, (0, 2, 1, 3)).reshape(B, S, H)


def _run_case(B, S, H, NH, matmul_dtype, atol, rtol):
    key = jax.random.PRNGKey(0)
    k1, k2, k3, k4, k5, k6, k7 = jax.random.split(key, 7)

    hidden_states = jax.random.normal(k1, (B, S, H), dtype=jnp.float32)

    # PyTorch nn.Linear weights: (out, in); biases: (out,).
    wq = jax.random.normal(k2, (H, H), dtype=jnp.float32) * 0.1
    wk = jax.random.normal(k3, (H, H), dtype=jnp.float32) * 0.1
    wv = jax.random.normal(k4, (H, H), dtype=jnp.float32) * 0.1
    bq = jax.random.normal(k5, (H,), dtype=jnp.float32) * 0.1
    bk = jax.random.normal(k6, (H,), dtype=jnp.float32) * 0.1
    bv = jax.random.normal(k7, (H,), dtype=jnp.float32) * 0.1

    # Standard BERT extended mask [B,1,1,S]: 0 keep / -10000 pad (last 2 of row 1 padded).
    pad = jnp.concatenate([jnp.ones((1, S), jnp.float32),
                           jnp.concatenate([jnp.ones((1, S - 2), jnp.float32),
                                            jnp.zeros((1, 2), jnp.float32)], axis=1)],
                          axis=0)[:B]
    attention_mask = (1.0 - pad)[:, None, None, :] * -10000.0

    out = bert_self_attention(hidden_states, attention_mask,
                              wq, bq, wk, bk, wv, bv,
                              num_attention_heads=NH, matmul_dtype=matmul_dtype)
    out = jax.block_until_ready(out)

    ref = reference(hidden_states, attention_mask, wq, bq, wk, bk, wv, bv, NH)
    assert out.shape == (B, S, H)
    err = jnp.max(jnp.abs(out - ref))
    assert jnp.allclose(out, ref, atol=atol, rtol=rtol), f"max err {err}"


if __name__ == "__main__":
    # Small config (single head-group fallback path), f32 MXU inputs, tight check.
    _run_case(B=2, S=8, H=32, NH=4, matmul_dtype=None, atol=5e-3, rtol=5e-3)
    # Grouped-head path (hd=64 -> 2 heads per 128-lane group), default bf16 MXU inputs.
    _run_case(B=2, S=16, H=256, NH=4, matmul_dtype=jnp.bfloat16, atol=5e-2, rtol=5e-2)
    print("KERNEL_OK")
</pallas_src>

<mosaic_0001>
module attributes {stable_mosaic.version = 11 : i64} {
  func.func @_self_attention_kernel(%arg0: i32, %arg1: i32, %arg2: memref<1x8x32xf32, #tpu.memory_space<vmem>>, %arg3: memref<1x1x8xf32, #tpu.memory_space<vmem>>, %arg4: memref<32x96xf32, #tpu.memory_space<vmem>>, %arg5: memref<1x96xf32, #tpu.memory_space<vmem>>, %arg6: memref<1x8x32xf32, #tpu.memory_space<vmem>>, %arg7: memref<8x96xf32, #tpu.memory_space<vmem>>) attributes {dimension_semantics = [#tpu.dimension_semantics<parallel>, #tpu.dimension_semantics<arbitrary>], iteration_bounds = array<i64: 2, 1>, scalar_prefetch = 0 : i64, scratch_operands = 1 : i64, tpu.core_type = #tpu.core_type<tc>, window_params = [{transform_indices = @transform_0, window_bounds = array<i64: 1, 8, 32>}, {transform_indices = @transform_1, window_bounds = array<i64: 1, 1, 8>}, {pipeline_mode = #tpu.pipeline_mode<synchronous>, transform_indices = @transform_2, window_bounds = array<i64: 32, 96>}, {pipeline_mode = #tpu.pipeline_mode<synchronous>, transform_indices = @transform_3, window_bounds = array<i64: 1, 96>}, {transform_indices = @transform_4, window_bounds = array<i64: 1, 8, 32>}]} {
    %c0_i32 = arith.constant 0 : i32
    %0 = arith.cmpi eq, %arg1, %c0_i32 : i32
    %1 = arith.extui %0 : i1 to i32
    %c0_i32_0 = arith.constant 0 : i32
    %2 = arith.cmpi ne, %1, %c0_i32_0 : i32
    scf.if %2 {
      %c0_13 = arith.constant 0 : index
      %c0_14 = arith.constant 0 : index
      %c0_15 = arith.constant 0 : index
      %32 = vector.load %arg2[%c0_13, %c0_14, %c0_15] : memref<1x8x32xf32, #tpu.memory_space<vmem>>, vector<1x8x32xf32>
      %33 = vector.shape_cast %32 : vector<1x8x32xf32> to vector<8x32xf32>
      %c0_16 = arith.constant 0 : index
      %c0_17 = arith.constant 0 : index
      %34 = vector.load %arg4[%c0_16, %c0_17] : memref<32x96xf32, #tpu.memory_space<vmem>>, vector<32x96xf32>
      %cst_18 = arith.constant dense<0.000000e+00> : vector<8x96xf32>
      %35 = tpu.matmul %33, %34, %cst_18 {dimension_numbers = #tpu.dot_dimension_numbers<[1], [0], [0], [1], [0, 0, 1, 1], [], []>} : vector<8x32xf32>, vector<32x96xf32>, vector<8x96xf32> -> vector<8x96xf32>
      %c0_19 = arith.constant 0 : index
      %c0_20 = arith.constant 0 : index
      %36 = vector.load %arg5[%c0_19, %c0_20] : memref<1x96xf32, #tpu.memory_space<vmem>>, vector<1x96xf32>
      %37 = vector.broadcast %36 : vector<1x96xf32> to vector<8x96xf32>
      %38 = arith.addf %35, %37 : vector<8x96xf32>
      %c0_21 = arith.constant 0 : index
      %c0_22 = arith.constant 0 : index
      %39 = vector.load %arg7[%c0_21, %c0_22] : memref<8x96xf32, #tpu.memory_space<vmem>>, vector<8x96xf32>
      tpu.vector_store %arg7[%c0_21, %c0_22], %38 {strides = array<i32>} : memref<8x96xf32, #tpu.memory_space<vmem>>, vector<8x96xf32>,
    } else {
    }
    %c0 = arith.constant 0 : index
    %c0_1 = arith.constant 0 : index
    %3 = vector.load %arg7[%c0, %c0_1] : memref<8x96xf32, #tpu.memory_space<vmem>>, vector<8x32xf32>
    %c0_2 = arith.constant 0 : index
    %c32 = arith.constant 32 : index
    %4 = vector.load %arg7[%c0_2, %c32] : memref<8x96xf32, #tpu.memory_space<vmem>>, vector<8x32xf32>
    %c0_3 = arith.constant 0 : index
    %c64 = arith.constant 64 : index
    %5 = vector.load %arg7[%c0_3, %c64] : memref<8x96xf32, #tpu.memory_space<vmem>>, vector<8x32xf32>
    %6 = vector.shape_cast %3 : vector<8x32xf32> to vector<8x4x8xf32>
    %7 = tpu.transpose %6, [1, 0, 2] : vector<8x4x8xf32> -> vector<4x8x8xf32>
    %8 = vector.shape_cast %4 : vector<8x32xf32> to vector<8x4x8xf32>
    %9 = tpu.transpose %8, [1, 0, 2] : vector<8x4x8xf32> -> vector<4x8x8xf32>
    %10 = vector.shape_cast %5 : vector<8x32xf32> to vector<8x4x8xf32>
    %11 = tpu.transpose %10, [1, 0, 2] : vector<8x4x8xf32> -> vector<4x8x8xf32>
    "tpu.trace_start"() <{level = 10 : i32, message = "gqd,gkd->gqk"}> : () -> ()
    %cst = arith.constant dense<0.000000e+00> : vector<4x8x8xf32>
    %12 = tpu.matmul %7, %9, %cst {dimension_numbers = #tpu.dot_dimension_numbers<[2], [2], [1], [1], [0, 0, 0, 1, 1, 1], [0], [0]>} : vector<4x8x8xf32>, vector<4x8x8xf32>, vector<4x8x8xf32> -> vector<4x8x8xf32>
    "tpu.trace_stop"() : () -> ()
    %c0_4 = arith.constant 0 : index
    %c0_5 = arith.constant 0 : index
    %c0_6 = arith.constant 0 : index
    %13 = vector.load %arg3[%c0_4, %c0_5, %c0_6] : memref<1x1x8xf32, #tpu.memory_space<vmem>>, vector<1x1x8xf32>
    %14 = vector.broadcast %13 : vector<1x1x8xf32> to vector<4x8x8xf32>
    %15 = arith.addf %12, %14 : vector<4x8x8xf32>
    %cst_7 = arith.constant dense<0xFF800000> : vector<4x8xf32>
    %16 = vector.multi_reduction <maximumf>, %15, %cst_7 [2] : vector<4x8x8xf32> to vector<4x8xf32>
    %17 = vector.shape_cast %16 : vector<4x8xf32> to vector<4x8x1xf32>
    %18 = vector.broadcast %17 : vector<4x8x1xf32> to vector<4x8x8xf32>
    %19 = arith.subf %15, %18 : vector<4x8x8xf32>
    %20 = math.exp %19 : vector<4x8x8xf32>
    %cst_8 = arith.constant dense<0.000000e+00> : vector<4x8xf32>
    %21 = vector.multi_reduction <add>, %20, %cst_8 [2] : vector<4x8x8xf32> to vector<4x8xf32>
    %22 = vector.shape_cast %21 : vector<4x8xf32> to vector<4x8x1xf32>
    "tpu.trace_start"() <{level = 10 : i32, message = "gqk,gkd->gqd"}> : () -> ()
    %cst_9 = arith.constant dense<0.000000e+00> : vector<4x8x8xf32>
    %23 = tpu.matmul %20, %11, %cst_9 {dimension_numbers = #tpu.dot_dimension_numbers<[2], [1], [1], [2], [0, 0, 0, 1, 1, 2], [0], [0]>} : vector<4x8x8xf32>, vector<4x8x8xf32>, vector<4x8x8xf32> -> vector<4x8x8xf32>
    "tpu.trace_stop"() : () -> ()
    %24 = tpu.reciprocal %22 {approx = true} : vector<4x8x1xf32> -> vector<4x8x1xf32>
    %25 = vector.broadcast %24 : vector<4x8x1xf32> to vector<4x8x8xf32>
    %26 = arith.mulf %23, %25 : vector<4x8x8xf32>
    %27 = tpu.transpose %26, [1, 0, 2] : vector<4x8x8xf32> -> vector<8x4x8xf32>
    %28 = vector.shape_cast %27 : vector<8x4x8xf32> to vector<8x32xf32>
    %c0_10 = arith.constant 0 : index
    %c0_11 = arith.constant 0 : index
    %c0_12 = arith.constant 0 : index
    %29 = vector.load %arg6[%c0_10, %c0_11, %c0_12] : memref<1x8x32xf32, #tpu.memory_space<vmem>>, vector<1x8x32xf32>
    %30 = vector.shape_cast %29 : vector<1x8x32xf32> to vector<8x32xf32>
    %31 = vector.shape_cast %28 : vector<8x32xf32> to vector<1x8x32xf32>
    tpu.vector_store %arg6[%c0_10, %c0_11, %c0_12], %31 {strides = array<i32>} : memref<1x8x32xf32, #tpu.memory_space<vmem>>, vector<1x8x32xf32>,
    return
  }
  func.func @transform_0(%arg0: i32, %arg1: i32) -> (i32, i32, i32) {
    %c0_i32 = arith.constant 0 : i32
    %c0_i32_0 = arith.constant 0 : i32
    %c0_i32_1 = arith.constant 0 : i32
    return %arg0, %c0_i32, %c0_i32_0 : i32, i32, i32
  }
  func.func @transform_1(%arg0: i32, %arg1: i32) -> (i32, i32, i32) {
    %c0_i32 = arith.constant 0 : i32
    %c0_i32_0 = arith.constant 0 : i32
    %c0_i32_1 = arith.constant 0 : i32
    return %arg0, %c0_i32, %c0_i32_0 : i32, i32, i32
  }
  func.func @transform_2(%arg0: i32, %arg1: i32) -> (i32, i32) {
    %c0_i32 = arith.constant 0 : i32
    %c0_i32_0 = arith.constant 0 : i32
    %c0_i32_1 = arith.constant 0 : i32
    return %c0_i32, %c0_i32_0 : i32, i32
  }
  func.func @transform_3(%arg0: i32, %arg1: i32) -> (i32, i32) {
    %c0_i32 = arith.constant 0 : i32
    %c0_i32_0 = arith.constant 0 : i32
    %c0_i32_1 = arith.constant 0 : i32
    return %c0_i32, %c0_i32_0 : i32, i32
  }
  func.func @transform_4(%arg0: i32, %arg1: i32) -> (i32, i32, i32) {
    %c0_i32 = arith.constant 0 : i32
    %c0_i32_0 = arith.constant 0 : i32
    return %arg0, %c0_i32, %arg1 : i32, i32, i32
  }
}

</mosaic_0001>

<llo_original>
// kernel: tpu_custom_call.1
$region0: #{tpu_custom_call.1}
  #allocation0 [shape = 'u32[]', space=smem, size = 0x4, offset = 0x4, fixed_abs, tag = 'smem constant byte address 0x4 - core index']
  #allocation1 [shape = 'u32[144,128]{1,0:T(1,128)}', space=vmem, size = 0x12000, scoped, tag = 'internal scratch']
  #allocation2 [shape = 'f32[8,96]{1,0:T(8,128)}', space=vmem, size = 0x1000, scoped, tag = 'scratch operand']
  %s0 = inlined_call_operand.hbm [shape: f32[2,8,32], index: 0, kind: input, shape index: {}]
  %s1 = inlined_call_operand.hbm [shape: f32[2,1,8], index: 1, kind: input, shape index: {}]
  %s2 = inlined_call_operand.hbm [shape: f32[32,96], index: 2, kind: input, shape index: {}]
  %s3 = inlined_call_operand.vmem [shape: f32[1,96], index: 3, kind: input, shape index: {}]
  %s4 = inlined_call_operand.hbm [shape: f32[2,8,32], index: 4, kind: output, shape index: {}]
  %s5 = sld [smem:[#allocation0]]
  $region65: #{tpu_custom_call.1} parent=0
    _
  %s7 = ssub.s32 1, %s5
  %s8 = scalar_select 0, %s7, %s5
  $region1: #{tpu_custom_call.1} parent=0
    #allocation3 [shape = 'u8[8192]{0}', space=vmem, size = 0x2000, scoped, tag = 'input window, operand 0']
    #allocation4 [shape = 's32[2]{0}', space=sflag, size = 0x8, scoped, tag = 'scoped memory for tpu_custom_call.1']
    #allocation5 [shape = 's32[2]{0}', space=sflag, size = 0x8, scoped, tag = 'scoped memory for tpu_custom_call.1']
    #allocation6 [shape = 'u8[1024]{0}', space=vmem, size = 0x400, scoped, tag = 'input window, operand 1']
    #allocation7 [shape = 's32[2]{0}', space=sflag, size = 0x8, scoped, tag = 'scoped memory for tpu_custom_call.1']
    #allocation8 [shape = 'u8[16384]{0}', space=vmem, size = 0x4000, scoped, tag = 'input window, operand 2, single buffered']
    #allocation9 [shape = 'u8[8192]{0}', space=vmem, size = 0x2000, scoped, tag = 'output window, operand 0']
    %9 = vsyncpa [#allocation4], 0
    %s10 = scalar_lea.sflag [#allocation4], 1
    %11 = vsyncpa %s10, 0
    %12 = vsyncpa [#allocation7], 0
    %s13 = scalar_lea.sflag [#allocation7], 1
    %14 = vsyncpa %s13, 0
    %15 = vsyncpa [#allocation5], 0
    %s16 = scalar_lea.sflag [#allocation5], 1
    %17 = vsyncpa %s16, 0
    loop: start=0, step=1, limit=4
    $region2: #{tpu_custom_call.1} parent=1 // loop_pre_header
      _
    $region3: #{tpu_custom_call.1} parent=1 // loop_header
      %s19 = sphi 0, %s23
      %p20 = scmp.ge.s32.totalorder %s19, 4
      %s26 = sphi 0, %s38
      %s27 = sphi 0, %s34
      %s28 = sphi 0, %s26
      %s29 = sphi 0, %s27
      %s30 = sphi 0, %s28
      %s31 = sphi 0, %s29
      %s41 = sphi 0, %s43
      %s44 = sphi 0, %s41
      %s45 = sphi 0, %s44
      %s61 = sphi 0, %s45
      %s67 = sphi 0, %s69
      %s70 = sphi 0, %s67
      %s71 = sphi 0, %s70
      %s87 = sphi 0, %s71
      %s91 = sphi 0, %s91
      %s93 = sphi 0, %s91
      %s94 = sphi 0, %s93
      %s108 = sphi 0, %s94
      %s112 = sphi 0, %s112
      %s114 = sphi 0, %s112
      %s115 = sphi 0, %s114
      %s129 = sphi 0, %s115
      %s137 = sphi 0, %s139
      %s140 = sphi 0, %s137
      %s141 = sphi 0, %s140
      %s157 = sphi 0, %s141
    $region4: #{tpu_custom_call.1} parent=1 // loop_header_branch
      %22 = sbr.rel (%p20) target = $region8
    $region5: #{tpu_custom_call.1} parent=1 // loop_body
      %s24 = ssub.s32 %s19, 1
      %s25 = ssub.s32 %s19, 2
      %s32 = sadd.s32 1, %s27
      %p33 = scmp.ge.s32.totalorder %s32, 1
      %s34 = scalar_select %p33, 0, %s32
      %s35 = sadd.s32 1, %s26
      %s36 = scalar_select %p33, %s35, %s26
      %p37 = scmp.ge.s32.totalorder %s36, 2
      %s38 = scalar_select %p37, 0, %s36
      %s39 = ssub.s32 %s26, %s38
      %p40 = scmp.eq.s32.totalorder %s39, 0
      %s42 = sadd.s32 %s41, 1
      %s43 = scalar_select %p40, %s41, %s42
      %p46 = pneg %p40
      %p47 = scmp.eq.s32.totalorder %s19, 1
      %p48 = por %p46, %p47
      %p49 = scmp.ne.s32.totalorder %s41, %s44
      %p50 = scmp.eq.s32.totalorder %s19, 0
      %p51 = por %p49, %p50
      %p52 = scmp.ne.s32.totalorder %s41, %s44
      %p53 = scmp.eq.s32.totalorder %s24, 1
      %p54 = por %p52, %p53
      %p55 = scmp.ne.s32.totalorder %s44, %s45
      %p56 = scmp.eq.s32.totalorder %s24, 0
      %p57 = por %p55, %p56
      %p58 = scmp.ne.s32.totalorder %s44, %s45
      %p59 = scmp.eq.s32.totalorder %s25, 1
      %p60 = por %p58, %p59
      %p62 = scmp.ne.s32.totalorder %s45, %s61
      %p63 = scmp.eq.s32.totalorder %s25, 0
      %p64 = por %p62, %p63
      %s65 = ssub.s32 %s26, %s38
      %p66 = scmp.eq.s32.totalorder %s65, 0
      %s68 = sadd.s32 %s67, 1
      %s69 = scalar_select %p66, %s67, %s68
      %p72 = pneg %p66
      %p73 = scmp.eq.s32.totalorder %s19, 1
      %p74 = por %p72, %p73
      %p75 = scmp.ne.s32.totalorder %s67, %s70
      %p76 = scmp.eq.s32.totalorder %s19, 0
      %p77 = por %p75, %p76
      %p78 = scmp.ne.s32.totalorder %s67, %s70
      %p79 = scmp.eq.s32.totalorder %s24, 1
      %p80 = por %p78, %p79
      %p81 = scmp.ne.s32.totalorder %s70, %s71
      %p82 = scmp.eq.s32.totalorder %s24, 0
      %p83 = por %p81, %p82
      %p84 = scmp.ne.s32.totalorder %s70, %s71
      %p85 = scmp.eq.s32.totalorder %s25, 1
      %p86 = por %p84, %p85
      %p88 = scmp.ne.s32.totalorder %s71, %s87
      %p89 = scmp.eq.s32.totalorder %s25, 0
      %p90 = por %p88, %p89
      %s92 = sadd.s32 %s91, 1
      %p95 = scmp.eq.s32.totalorder %s19, 1
      %p96 = scmp.ne.s32.totalorder %s91, %s93
      %p97 = scmp.eq.s32.totalorder %s19, 0
      %p98 = por %p96, %p97
      %p99 = scmp.ne.s32.totalorder %s91, %s93
      %p100 = scmp.eq.s32.totalorder %s24, 1
      %p101 = por %p99, %p100
      %p102 = scmp.ne.s32.totalorder %s93, %s94
      %p103 = scmp.eq.s32.totalorder %s24, 0
      %p104 = por %p102, %p103
      %p105 = scmp.ne.s32.totalorder %s93, %s94
      %p106 = scmp.eq.s32.totalorder %s25, 1
      %p107 = por %p105, %p106
      %p109 = scmp.ne.s32.totalorder %s94, %s108
      %p110 = scmp.eq.s32.totalorder %s25, 0
      %p111 = por %p109, %p110
      %s113 = sadd.s32 %s112, 1
      %p116 = scmp.eq.s32.totalorder %s19, 1
      %p117 = scmp.ne.s32.totalorder %s112, %s114
      %p118 = scmp.eq.s32.totalorder %s19, 0
      %p119 = por %p117, %p118
      %p120 = scmp.ne.s32.totalorder %s112, %s114
      %p121 = scmp.eq.s32.totalorder %s24, 1
      %p122 = por %p120, %p121
      %p123 = scmp.ne.s32.totalorder %s114, %s115
      %p124 = scmp.eq.s32.totalorder %s24, 0
      %p125 = por %p123, %p124
      %p126 = scmp.ne.s32.totalorder %s114, %s115
      %p127 = scmp.eq.s32.totalorder %s25, 1
      %p128 = por %p126, %p127
      %p130 = scmp.ne.s32.totalorder %s115, %s129
      %p131 = scmp.eq.s32.totalorder %s25, 0
      %p132 = por %p130, %p131
      %s133 = ssub.s32 %s26, %s38
      %s134 = ssub.s32 %s27, %s34
      %s135 = sor.u32 %s133, %s134
      %p136 = scmp.eq.s32.totalorder %s135, 0
      %s138 = sadd.s32 %s137, 1
      %s139 = scalar_select %p136, %s137, %s138
      %p142 = pneg %p136
      %p143 = scmp.eq.s32.totalorder %s19, 1
      %p144 = por %p142, %p143
      %p145 = scmp.ne.s32.totalorder %s137, %s140
      %p146 = scmp.eq.s32.totalorder %s19, 0
      %p147 = por %p145, %p146
      %p148 = scmp.ne.s32.totalorder %s137, %s140
      %p149 = scmp.eq.s32.totalorder %s24, 1
      %p150 = por %p148, %p149
      %p151 = scmp.ne.s32.totalorder %s140, %s141
      %p152 = scmp.eq.s32.totalorder %s24, 0
      %p153 = por %p151, %p152
      %p154 = scmp.ne.s32.totalorder %s140, %s141
      %p155 = scmp.eq.s32.totalorder %s25, 1
      %p156 = por %p154, %p155
      %p158 = scmp.ne.s32.totalorder %s141, %s157
      %p159 = scmp.eq.s32.totalorder %s25, 0
      %p160 = por %p158, %p159
      %p161 = scmp.le.s32.totalorder 1, %s19
      %p162 = scmp.lt.s32.totalorder %s19, 3
      %p163 = pnand %p161, %p162
      %p164 = pneg %p163
      // Predicated region
      $region9: #{tpu_custom_call.1} parent=5 // pred_check
        _
      $region10: #{tpu_custom_call.1} parent=5 // pred_check_branch
        %166 = sbr.rel (%p163) target = $region12
      $region11: #{tpu_custom_call.1} parent=5 // pred_region
        %s167 = ssub.s32 %s19, 1
        // Predicated region
        $region13: #{tpu_custom_call.1} parent=11 // pred_check
          %p168 = pneg %p104
        $region14: #{tpu_custom_call.1} parent=11 // pred_check_branch
          %170 = sbr.rel (%p168) target = $region16
        $region15: #{tpu_custom_call.1} parent=11 // pred_region
          %s172 = ssub.s32 512, 512
          %173 = vsyncadd [#allocation7], %s172
          %s174 = sshll.u32 [#allocation8], 4
          %s175 = int_to_ptr.vmem [resolvable:$true] %s174
          %180 = dma.hbm_to_vmem [thread:$0]  %s2, 512, %s175, [#allocation7], 128, 128, 8
        $region16: #{tpu_custom_call.1} parent=11 // pred_fallthru
          _
        // Predicated region
        $region17: #{tpu_custom_call.1} parent=11 // pred_check
          %p181 = pneg %p125
        $region18: #{tpu_custom_call.1} parent=11 // pred_check_branch
          %183 = sbr.rel (%p181) target = $region20
        $region19: #{tpu_custom_call.1} parent=11 // pred_region
          _
        $region20: #{tpu_custom_call.1} parent=11 // pred_fallthru
          _
      $region12: #{tpu_custom_call.1} parent=5 // pred_fallthru
        _
      %p184 = scmp.lt.s32.totalorder %s19, 2
      // Predicated region
      $region21: #{tpu_custom_call.1} parent=5 // pred_check
        %p185 = pneg %p184
      $region22: #{tpu_custom_call.1} parent=5 // pred_check_branch
        %187 = sbr.rel (%p185) target = $region24
      $region23: #{tpu_custom_call.1} parent=5 // pred_region
        // Predicated region
        $region25: #{tpu_custom_call.1} parent=23 // pred_check
          %p188 = pneg %p51
        $region26: #{tpu_custom_call.1} parent=23 // pred_check_branch
          %190 = sbr.rel (%p188) target = $region28
        $region27: #{tpu_custom_call.1} parent=23 // pred_region
          %s191 = sand.u32 %s41, 1
          %s192 = scalar_lea.sflag [#allocation4], %s191
          %s193 = sand.u32 %s41, 1
          %s194 = smul.addr %s193, 8
          %s195 = scalar_lea.vmem [#allocation3], %s194
          %s197 = ssub.s32 128, 128
          %198 = vsyncadd %s192, %s197
          %s199 = smul.addr %s26, 128
          %s200 = scalar_lea.hbm %s0, %s199
          %s202 = sshll.u32 %s195, 4
          %s203 = int_to_ptr.vmem [resolvable:$true] %s202
          %205 = dma.hbm_to_vmem [thread:$0]  %s200, 128, %s203, %s192
        $region28: #{tpu_custom_call.1} parent=23 // pred_fallthru
          _
        // Predicated region
        $region29: #{tpu_custom_call.1} parent=23 // pred_check
          %p206 = pneg %p77
        $region30: #{tpu_custom_call.1} parent=23 // pred_check_branch
          %208 = sbr.rel (%p206) target = $region32
        $region31: #{tpu_custom_call.1} parent=23 // pred_region
          %s209 = sand.u32 %s19, 1
          %s210 = scalar_lea.sflag [#allocation7], %s209
          %s211 = sand.u32 %s67, 1
          %s212 = scalar_lea.vmem [#allocation6], %s211
          %s214 = ssub.s32 16, 16
          %215 = vsyncadd %s210, %s214
          %s216 = smul.addr %s26, 16
          %s217 = scalar_lea.hbm %s1, %s216
          %s219 = sshll.u32 %s212, 4
          %s220 = int_to_ptr.vmem [resolvable:$true] %s219
          %222 = dma.hbm_to_vmem [thread:$0]  %s217, 16, %s220, %s210
        $region32: #{tpu_custom_call.1} parent=23 // pred_fallthru
          _
      $region24: #{tpu_custom_call.1} parent=5 // pred_fallthru
        _
      %p223 = scmp.le.s32.totalorder 1, %s19
      %p224 = scmp.lt.s32.totalorder %s19, 3
      %p225 = pnand %p223, %p224
      %p226 = pneg %p225
      // Predicated region
      $region33: #{tpu_custom_call.1} parent=5 // pred_check
        _
      $region34: #{tpu_custom_call.1} parent=5 // pred_check_branch
        %228 = sbr.rel (%p225) target = $region36
      $region35: #{tpu_custom_call.1} parent=5 // pred_region
        %s229 = ssub.s32 %s19, 1
        %s230 = sand.u32 %s44, 1
        %s231 = scalar_lea.sflag [#allocation4], %s230
        %s232 = sand.u32 %s44, 1
        %s233 = smul.addr %s232, 8
        %s234 = scalar_lea.vmem [#allocation3], %s233
        // Predicated region
        $region37: #{tpu_custom_call.1} parent=35 // pred_check
          %p235 = pneg %p57
        $region38: #{tpu_custom_call.1} parent=35 // pred_check_branch
          %237 = sbr.rel (%p235) target = $region40
        $region39: #{tpu_custom_call.1} parent=35 // pred_region
          %238 = dma.done %s231, 128
        $region40: #{tpu_custom_call.1} parent=35 // pred_fallthru
          _
        %s239 = sand.u32 %s24, 1
        %s240 = scalar_lea.sflag [#allocation7], %s239
        %s241 = sand.u32 %s70, 1
        %s242 = scalar_lea.vmem [#allocation6], %s241
        // Predicated region
        $region41: #{tpu_custom_call.1} parent=35 // pred_check
          %p243 = pneg %p83
        $region42: #{tpu_custom_call.1} parent=35 // pred_check_branch
          %245 = sbr.rel (%p243) target = $region44
        $region43: #{tpu_custom_call.1} parent=35 // pred_region
          %246 = dma.done %s240, 16
        $region44: #{tpu_custom_call.1} parent=35 // pred_fallthru
          _
        // Predicated region
        $region45: #{tpu_custom_call.1} parent=35 // pred_check
          %p247 = pneg %p104
        $region46: #{tpu_custom_call.1} parent=35 // pred_check_branch
          %249 = sbr.rel (%p247) target = $region48
        $region47: #{tpu_custom_call.1} parent=35 // pred_region
          %250 = dma.done [#allocation7], 512
        $region48: #{tpu_custom_call.1} parent=35 // pred_fallthru
          _
        %s251 = sand.u32 %s44, 1
        %s252 = scalar_lea.sflag [#allocation4], %s251
        %s253 = sand.u32 %s44, 1
        %s254 = smul.addr %s253, 8
        %s255 = scalar_lea.vmem [#allocation3], %s254
        %p256 = pneg %p57
        %p257 = pneg %p54
        %s258 = sand.u32 %s24, 1
        %s259 = scalar_lea.sflag [#allocation7], %s258
        %s260 = sand.u32 %s70, 1
        %s261 = scalar_lea.vmem [#allocation6], %s260
        %p262 = pneg %p83
        %p263 = pneg %p80
        %p264 = pneg %p104
        %p265 = pneg %p101
        %p266 = pneg %p125
        %p267 = pneg %p122
        %p268 = pneg %p153
        %p269 = pneg %p150
        %s270 = sand.u32 %s140, 1
        %s271 = scalar_lea.sflag [#allocation5], %s270
        %s272 = sand.u32 %s140, 1
        %s273 = smul.addr %s272, 8
        %s274 = scalar_lea.vmem [#allocation9], %s273
        %p275 = scmp.eq.s32.totalorder %s29, 0
        // Predicated region
        $region49: #{tpu_custom_call.1} parent=35 // pred_check
          %p276 = pneg %p275
        $region50: #{tpu_custom_call.1} parent=35 // pred_check_branch
          %278 = sbr.rel (%p276) target = $region52
        $region51: #{tpu_custom_call.1} parent=35 // pred_region
          %v279 = vld [vmem:[%s234] sm:$0xff]
          %v280 = vld [vmem:[#allocation8] sm:$0xff]
          %v281 = vld [vmem:[#allocation8 + $0x8] sm:$0xff]
          %v282 = vld [vmem:[#allocation8 + $0x10] sm:$0xff]
          %v283 = vld [vmem:[#allocation8 + $0x18] sm:$0xff]
          %v284 = vld [vmem:[%s3] sm:$0x1]
          %v286 = vlaneseq
          %v287 = vshrl.u32 %v286, 7
          %v288 = vsub.s32 0, %v287
          %v289 = vrot.slane %v284, %v288
          %vm291 = vcmask 261120
          %v293 = vsel %vm291, %v279, 0
          %295 = vmatprep.subr.mxu0 0.0
          %296 = vmatpush1.msra.mxu0 0.0
          %297 = vmatprep.subr.mxu0 0.0
          %298 = vmatpush1.msra.mxu0 0.0
          %299 = vmatprep.subr.mxu0 0.0
          %300 = vmatpush1.msra.mxu0 0.0
          %301 = vmatprep.subr.mxu0 0.0
          %302 = vmatpush1.msra.mxu0 0.0
          %303 = vmatprep.subr.mxu0 0.0
          %304 = vmatpush1.msra.mxu0 0.0
          %305 = vmatprep.subr.mxu0 0.0
          %306 = vmatpush1.msra.mxu0 0.0
          %307 = vmatprep.subr.mxu0 0.0
          %308 = vmatpush1.msra.mxu0 0.0
          %309 = vmatprep.subr.mxu0 0.0
          %310 = vmatpush1.msra.mxu0 0.0
          %311 = vmatprep.subr.mxu0 0.0
          %312 = vmatpush1.msra.mxu0 0.0
          %313 = vmatprep.subr.mxu0 0.0
          %314 = vmatpush1.msra.mxu0 0.0
          %315 = vmatprep.subr.mxu0 0.0
          %316 = vmatpush1.msra.mxu0 0.0
          %317 = vmatprep.subr.mxu0 0.0
          %318 = vmatpush1.msra.mxu0 0.0
          %319 = vmatprep.subr.mxu0 0.0
          %320 = vmatpush1.msra.mxu0 %v283
          %321 = vmatprep.subr.mxu0 0.0
          %322 = vmatpush1.msra.mxu0 %v282
          %323 = vmatprep.subr.mxu0 0.0
          %324 = vmatpush1.msra.mxu0 %v281
          %325 = vmatprep.subr.mxu0 0.0
          %326 = vmatpush1.msra.mxu0 %v280
          %327 = vmatprep.subr.mxu0 0.0
          %328 = vmatpush2.msra.mxu0 0.0
          %329 = vmatprep.subr.mxu0 0.0
          %330 = vmatpush2.msra.mxu0 0.0
          %331 = vmatprep.subr.mxu0 0.0
          %332 = vmatpush2.msra.mxu0 0.0
          %333 = vmatprep.subr.mxu0 0.0
          %334 = vmatpush2.msra.mxu0 0.0
          %335 = vmatprep.subr.mxu0 0.0
          %336 = vmatpush2.msra.mxu0 0.0
          %337 = vmatprep.subr.mxu0 0.0
          %338 = vmatpush2.msra.mxu0 0.0
          %339 = vmatprep.subr.mxu0 0.0
          %340 = vmatpush2.msra.mxu0 0.0
          %341 = vmatprep.subr.mxu0 0.0
          %342 = vmatpush2.msra.mxu0 0.0
          %343 = vmatprep.subr.mxu0 0.0
          %344 = vmatpush2.msra.mxu0 0.0
          %345 = vmatprep.subr.mxu0 0.0
          %346 = vmatpush2.msra.mxu0 0.0
          %347 = vmatprep.subr.mxu0 0.0
          %348 = vmatpush2.msra.mxu0 0.0
          %349 = vmatprep.subr.mxu0 0.0
          %350 = vmatpush2.msra.mxu0 0.0
          %351 = vmatprep.subr.mxu0 0.0
          %352 = vmatpush2.msra.mxu0 0.0
          %353 = vmatprep.subr.mxu0 0.0
          %354 = vmatpush2.msra.mxu0 0.0
          %355 = vmatprep.subr.mxu0 0.0
          %356 = vmatpush2.msra.mxu0 0.0
          %357 = vmatprep.subr.mxu0 0.0
          %358 = vmatpush2.msra.mxu0 0.0
          %359 = vmatprep.mubr.f32.mxu0 0.0
          %360 = vmatmul.mubr.f32.gmra.mxu0 %v293
          %v361 = vpop.f32.mrf.mxu0
          %v362 = vadd.f32 %v289, %v361
          %v363 = vpop.f32.mrf.mxu0
          %364 = vdwg.mxu0
          %vm365 = vcmask 785408
          %366 = vst.msk [vmem:[#allocation2] sm:$0xff] %vm365, %v362
        $region52: #{tpu_custom_call.1} parent=35 // pred_fallthru
          _
        %v367 = vld [vmem:[#allocation2] sm:$0xff]
        %369 = vrot.lane.b32.xlu0 %v367, 120
        %v370 = vpop.permute.xlu0 %369
        %372 = vrot.lane.b32.xlu0 %v367, 112
        %v373 = vpop.permute.xlu0 %372
        %375 = vrot.lane.b32.xlu0 %v367, 104
        %v376 = vpop.permute.xlu0 %375
        %v378 = vcombine.low %v367, %v373
        %v379 = vcombine.high %v367, %v373
        %v381 = vunpack.c.l.s4 1983009808
        %v382 = vunpack.c.0.s8 %v381
        %v383 = vlaneseq
        %v384 = vshrl.u32 %v383, 7
        %v385 = vsub.s32 %v382, %v384
        %v386 = vrot.slane %v378, %v385
        %v388 = vunpack.c.l.s4 1983009808
        %v389 = vunpack.c.0.s8 %v388
        %v390 = vlaneseq
        %v391 = vshrl.u32 %v390, 7
        %v392 = vsub.s32 %v389, %v391
        %v393 = vrot.slane %v379, %v392
        %v394 = vcombine.low %v370, %v376
        %v395 = vcombine.high %v370, %v376
        %v397 = vunpack.c.l.s4 1983009808
        %v398 = vunpack.c.0.s8 %v397
        %v399 = vlaneseq
        %v400 = vshrl.u32 %v399, 7
        %v401 = vsub.s32 %v398, %v400
        %v402 = vrot.slane %v394, %v401
        %v404 = vunpack.c.l.s4 1983009808
        %v405 = vunpack.c.0.s8 %v404
        %v406 = vlaneseq
        %v407 = vshrl.u32 %v406, 7
        %v408 = vsub.s32 %v405, %v407
        %v409 = vrot.slane %v395, %v408
        %v410 = vcombine.low %v386, %v402
        %v411 = vcombine.high %v386, %v402
        %v413 = vunpack.c.l.s4 1934713408
        %v414 = vunpack.c.0.s8 %v413
        %v415 = vlaneseq
        %v416 = vshrl.u32 %v415, 7
        %v417 = vsub.s32 %v414, %v416
        %v418 = vrot.slane %v410, %v417
        %v420 = vunpack.c.l.s4 1934713408
        %v421 = vunpack.c.0.s8 %v420
        %v422 = vlaneseq
        %v423 = vshrl.u32 %v422, 7
        %v424 = vsub.s32 %v421, %v423
        %v425 = vrot.slane %v411, %v424
        %v426 = vcombine.low %v393, %v409
        %v427 = vcombine.high %v393, %v409
        %v429 = vunpack.c.l.s4 1934713408
        %v430 = vunpack.c.0.s8 %v429
        %v431 = vlaneseq
        %v432 = vshrl.u32 %v431, 7
        %v433 = vsub.s32 %v430, %v432
        %v434 = vrot.slane %v426, %v433
        %v436 = vunpack.c.l.s4 1934713408
        %v437 = vunpack.c.0.s8 %v436
        %v438 = vlaneseq
        %v439 = vshrl.u32 %v438, 7
        %v440 = vsub.s32 %v437, %v439
        %v441 = vrot.slane %v427, %v440
        %v442 = vcombine.high %v418, 0.0
        %v443 = vcombine.high %v425, 0.0
        %v444 = vcombine.high %v434, 0.0
        %v445 = vcombine.high %v441, 0.0
        %v446 = vcombine.low %v418, %v425
        %v448 = vunpack.c.l.s4 1983009808
        %v449 = vunpack.c.0.s8 %v448
        %v450 = vlaneseq
        %v451 = vshrl.u32 %v450, 7
        %v452 = vsub.s32 %v449, %v451
        %v453 = vrot.slane %v446, %v452
        %v454 = vcombine.low %v442, %v443
        %v456 = vunpack.c.l.s4 1983009808
        %v457 = vunpack.c.0.s8 %v456
        %v458 = vlaneseq
        %v459 = vshrl.u32 %v458, 7
        %v460 = vsub.s32 %v457, %v459
        %v461 = vrot.slane %v454, %v460
        %v462 = vcombine.low %v434, %v441
        %v464 = vunpack.c.l.s4 1983009808
        %v465 = vunpack.c.0.s8 %v464
        %v466 = vlaneseq
        %v467 = vshrl.u32 %v466, 7
        %v468 = vsub.s32 %v465, %v467
        %v469 = vrot.slane %v462, %v468
        %v470 = vcombine.low %v444, %v445
        %v472 = vunpack.c.l.s4 1983009808
        %v473 = vunpack.c.0.s8 %v472
        %v474 = vlaneseq
        %v475 = vshrl.u32 %v474, 7
        %v476 = vsub.s32 %v473, %v475
        %v477 = vrot.slane %v470, %v476
        %v478 = vcombine.low %v453, %v461
        %v479 = vcombine.high %v453, %v461
        %v481 = vunpack.c.l.s4 1934713408
        %v482 = vunpack.c.0.s8 %v481
        %v483 = vlaneseq
        %v484 = vshrl.u32 %v483, 7
        %v485 = vsub.s32 %v482, %v484
        %v486 = vrot.slane %v478, %v485
        %v488 = vunpack.c.l.s4 1934713408
        %v489 = vunpack.c.0.s8 %v488
        %v490 = vlaneseq
        %v491 = vshrl.u32 %v490, 7
        %v492 = vsub.s32 %v489, %v491
        %v493 = vrot.slane %v479, %v492
        %v494 = vcombine.low %v469, %v477
        %v495 = vcombine.high %v469, %v477
        %v497 = vunpack.c.l.s4 1934713408
        %v498 = vunpack.c.0.s8 %v497
        %v499 = vlaneseq
        %v500 = vshrl.u32 %v499, 7
        %v501 = vsub.s32 %v498, %v500
        %v502 = vrot.slane %v494, %v501
        %v504 = vunpack.c.l.s4 1934713408
        %v505 = vunpack.c.0.s8 %v504
        %v506 = vlaneseq
        %v507 = vshrl.u32 %v506, 7
        %v508 = vsub.s32 %v505, %v507
        %v509 = vrot.slane %v495, %v508
        %v510 = vcombine.low %v486, %v502
        %v511 = vcombine.high %v486, %v502
        %v512 = vcombine.low %v493, %v509
        %v513 = vcombine.high %v493, %v509
        %514 = vrot.lane.b32.xlu0 %v367, 96
        %v515 = vpop.permute.xlu0 %514
        %516 = vrot.lane.b32.xlu0 %v370, 96
        %v517 = vpop.permute.xlu0 %516
        %518 = vrot.lane.b32.xlu0 %v373, 96
        %v519 = vpop.permute.xlu0 %518
        %520 = vrot.lane.b32.xlu0 %v376, 96
        %v521 = vpop.permute.xlu0 %520
        %v526 = vcombine.low %v515, %v519
        %v527 = vcombine.high %v515, %v519
        %v529 = vunpack.c.l.s4 1983009808
        %v530 = vunpack.c.0.s8 %v529
        %v531 = vlaneseq
        %v532 = vshrl.u32 %v531, 7
        %v533 = vsub.s32 %v530, %v532
        %v534 = vrot.slane %v526, %v533
        %v536 = vunpack.c.l.s4 1983009808
        %v537 = vunpack.c.0.s8 %v536
        %v538 = vlaneseq
        %v539 = vshrl.u32 %v538, 7
        %v540 = vsub.s32 %v537, %v539
        %v541 = vrot.slane %v527, %v540
        %v542 = vcombine.low %v517, %v521
        %v543 = vcombine.high %v517, %v521
        %v545 = vunpack.c.l.s4 1983009808
        %v546 = vunpack.c.0.s8 %v545
        %v547 = vlaneseq
        %v548 = vshrl.u32 %v547, 7
        %v549 = vsub.s32 %v546, %v548
        %v550 = vrot.slane %v542, %v549
        %v552 = vunpack.c.l.s4 1983009808
        %v553 = vunpack.c.0.s8 %v552
        %v554 = vlaneseq
        %v555 = vshrl.u32 %v554, 7
        %v556 = vsub.s32 %v553, %v555
        %v557 = vrot.slane %v543, %v556
        %v558 = vcombine.low %v534, %v550
        %v559 = vcombine.high %v534, %v550
        %v561 = vunpack.c.l.s4 1934713408
        %v562 = vunpack.c.0.s8 %v561
        %v563 = vlaneseq
        %v564 = vshrl.u32 %v563, 7
        %v565 = vsub.s32 %v562, %v564
        %v566 = vrot.slane %v558, %v565
        %v568 = vunpack.c.l.s4 1934713408
        %v569 = vunpack.c.0.s8 %v568
        %v570 = vlaneseq
        %v571 = vshrl.u32 %v570, 7
        %v572 = vsub.s32 %v569, %v571
        %v573 = vrot.slane %v559, %v572
        %v574 = vcombine.low %v541, %v557
        %v575 = vcombine.high %v541, %v557
        %v577 = vunpack.c.l.s4 1934713408
        %v578 = vunpack.c.0.s8 %v577
        %v579 = vlaneseq
        %v580 = vshrl.u32 %v579, 7
        %v581 = vsub.s32 %v578, %v580
        %v582 = vrot.slane %v574, %v581
        %v584 = vunpack.c.l.s4 1934713408
        %v585 = vunpack.c.0.s8 %v584
        %v586 = vlaneseq
        %v587 = vshrl.u32 %v586, 7
        %v588 = vsub.s32 %v585, %v587
        %v589 = vrot.slane %v575, %v588
        %v590 = vcombine.high %v566, 0.0
        %v591 = vcombine.high %v573, 0.0
        %v592 = vcombine.high %v582, 0.0
        %v593 = vcombine.high %v589, 0.0
        %v594 = vcombine.low %v566, %v573
        %v596 = vunpack.c.l.s4 1983009808
        %v597 = vunpack.c.0.s8 %v596
        %v598 = vlaneseq
        %v599 = vshrl.u32 %v598, 7
        %v600 = vsub.s32 %v597, %v599
        %v601 = vrot.slane %v594, %v600
        %v602 = vcombine.low %v590, %v591
        %v604 = vunpack.c.l.s4 1983009808
        %v605 = vunpack.c.0.s8 %v604
        %v606 = vlaneseq
        %v607 = vshrl.u32 %v606, 7
        %v608 = vsub.s32 %v605, %v607
        %v609 = vrot.slane %v602, %v608
        %v610 = vcombine.low %v582, %v589
        %v612 = vunpack.c.l.s4 1983009808
        %v613 = vunpack.c.0.s8 %v612
        %v614 = vlaneseq
        %v615 = vshrl.u32 %v614, 7
        %v616 = vsub.s32 %v613, %v615
        %v617 = vrot.slane %v610, %v616
        %v618 = vcombine.low %v592, %v593
        %v620 = vunpack.c.l.s4 1983009808
        %v621 = vunpack.c.0.s8 %v620
        %v622 = vlaneseq
        %v623 = vshrl.u32 %v622, 7
        %v624 = vsub.s32 %v621, %v623
        %v625 = vrot.slane %v618, %v624
        %v626 = vcombine.low %v601, %v609
        %v627 = vcombine.high %v601, %v609
        %v629 = vunpack.c.l.s4 1934713408
        %v630 = vunpack.c.0.s8 %v629
        %v631 = vlaneseq
        %v632 = vshrl.u32 %v631, 7
        %v633 = vsub.s32 %v630, %v632
        %v634 = vrot.slane %v626, %v633
        %v636 = vunpack.c.l.s4 1934713408
        %v637 = vunpack.c.0.s8 %v636
        %v638 = vlaneseq
        %v639 = vshrl.u32 %v638, 7
        %v640 = vsub.s32 %v637, %v639
        %v641 = vrot.slane %v627, %v640
        %v642 = vcombine.low %v617, %v625
        %v643 = vcombine.high %v617, %v625
        %v645 = vunpack.c.l.s4 1934713408
        %v646 = vunpack.c.0.s8 %v645
        %v647 = vlaneseq
        %v648 = vshrl.u32 %v647, 7
        %v649 = vsub.s32 %v646, %v648
        %v650 = vrot.slane %v642, %v649
        %v652 = vunpack.c.l.s4 1934713408
        %v653 = vunpack.c.0.s8 %v652
        %v654 = vlaneseq
        %v655 = vshrl.u32 %v654, 7
        %v656 = vsub.s32 %v653, %v655
        %v657 = vrot.slane %v643, %v656
        %v658 = vcombine.low %v634, %v650
        %v659 = vcombine.high %v634, %v650
        %v660 = vcombine.low %v641, %v657
        %v661 = vcombine.high %v641, %v657
        %662 = vrot.lane.b32.xlu0 %v367, 64
        %v663 = vpop.permute.xlu0 %662
        %664 = vrot.lane.b32.xlu0 %v370, 64
        %v665 = vpop.permute.xlu0 %664
        %666 = vrot.lane.b32.xlu0 %v373, 64
        %v667 = vpop.permute.xlu0 %666
        %668 = vrot.lane.b32.xlu0 %v376, 64
        %v669 = vpop.permute.xlu0 %668
        %v674 = vcombine.low %v663, %v667
        %v675 = vcombine.high %v663, %v667
        %v677 = vunpack.c.l.s4 1983009808
        %v678 = vunpack.c.0.s8 %v677
        %v679 = vlaneseq
        %v680 = vshrl.u32 %v679, 7
        %v681 = vsub.s32 %v678, %v680
        %v682 = vrot.slane %v674, %v681
        %v684 = vunpack.c.l.s4 1983009808
        %v685 = vunpack.c.0.s8 %v684
        %v686 = vlaneseq
        %v687 = vshrl.u32 %v686, 7
        %v688 = vsub.s32 %v685, %v687
        %v689 = vrot.slane %v675, %v688
        %v690 = vcombine.low %v665, %v669
        %v691 = vcombine.high %v665, %v669
        %v693 = vunpack.c.l.s4 1983009808
        %v694 = vunpack.c.0.s8 %v693
        %v695 = vlaneseq
        %v696 = vshrl.u32 %v695, 7
        %v697 = vsub.s32 %v694, %v696
        %v698 = vrot.slane %v690, %v697
        %v700 = vunpack.c.l.s4 1983009808
        %v701 = vunpack.c.0.s8 %v700
        %v702 = vlaneseq
        %v703 = vshrl.u32 %v702, 7
        %v704 = vsub.s32 %v701, %v703
        %v705 = vrot.slane %v691, %v704
        %v706 = vcombine.low %v682, %v698
        %v707 = vcombine.high %v682, %v698
        %v709 = vunpack.c.l.s4 1934713408
        %v710 = vunpack.c.0.s8 %v709
        %v711 = vlaneseq
        %v712 = vshrl.u32 %v711, 7
        %v713 = vsub.s32 %v710, %v712
        %v714 = vrot.slane %v706, %v713
        %v716 = vunpack.c.l.s4 1934713408
        %v717 = vunpack.c.0.s8 %v716
        %v718 = vlaneseq
        %v719 = vshrl.u32 %v718, 7
        %v720 = vsub.s32 %v717, %v719
        %v721 = vrot.slane %v707, %v720
        %v722 = vcombine.low %v689, %v705
        %v723 = vcombine.high %v689, %v705
        %v725 = vunpack.c.l.s4 1934713408
        %v726 = vunpack.c.0.s8 %v725
        %v727 = vlaneseq
        %v728 = vshrl.u32 %v727, 7
        %v729 = vsub.s32 %v726, %v728
        %v730 = vrot.slane %v722, %v729
        %v732 = vunpack.c.l.s4 1934713408
        %v733 = vunpack.c.0.s8 %v732
        %v734 = vlaneseq
        %v735 = vshrl.u32 %v734, 7
        %v736 = vsub.s32 %v733, %v735
        %v737 = vrot.slane %v723, %v736
        %v738 = vcombine.high %v714, 0.0
        %v739 = vcombine.high %v721, 0.0
        %v740 = vcombine.high %v730, 0.0
        %v741 = vcombine.high %v737, 0.0
        %v742 = vcombine.low %v714, %v721
        %v744 = vunpack.c.l.s4 1983009808
        %v745 = vunpack.c.0.s8 %v744
        %v746 = vlaneseq
        %v747 = vshrl.u32 %v746, 7
        %v748 = vsub.s32 %v745, %v747
        %v749 = vrot.slane %v742, %v748
        %v750 = vcombine.low %v738, %v739
        %v752 = vunpack.c.l.s4 1983009808
        %v753 = vunpack.c.0.s8 %v752
        %v754 = vlaneseq
        %v755 = vshrl.u32 %v754, 7
        %v756 = vsub.s32 %v753, %v755
        %v757 = vrot.slane %v750, %v756
        %v758 = vcombine.low %v730, %v737
        %v760 = vunpack.c.l.s4 1983009808
        %v761 = vunpack.c.0.s8 %v760
        %v762 = vlaneseq
        %v763 = vshrl.u32 %v762, 7
        %v764 = vsub.s32 %v761, %v763
        %v765 = vrot.slane %v758, %v764
        %v766 = vcombine.low %v740, %v741
        %v768 = vunpack.c.l.s4 1983009808
        %v769 = vunpack.c.0.s8 %v768
        %v770 = vlaneseq
        %v771 = vshrl.u32 %v770, 7
        %v772 = vsub.s32 %v769, %v771
        %v773 = vrot.slane %v766, %v772
        %v774 = vcombine.low %v749, %v757
        %v775 = vcombine.high %v749, %v757
        %v777 = vunpack.c.l.s4 1934713408
        %v778 = vunpack.c.0.s8 %v777
        %v779 = vlaneseq
        %v780 = vshrl.u32 %v779, 7
        %v781 = vsub.s32 %v778, %v780
        %v782 = vrot.slane %v774, %v781
        %v784 = vunpack.c.l.s4 1934713408
        %v785 = vunpack.c.0.s8 %v784
        %v786 = vlaneseq
        %v787 = vshrl.u32 %v786, 7
        %v788 = vsub.s32 %v785, %v787
        %v789 = vrot.slane %v775, %v788
        %v790 = vcombine.low %v765, %v773
        %v791 = vcombine.high %v765, %v773
        %v793 = vunpack.c.l.s4 1934713408
        %v794 = vunpack.c.0.s8 %v793
        %v795 = vlaneseq
        %v796 = vshrl.u32 %v795, 7
        %v797 = vsub.s32 %v794, %v796
        %v798 = vrot.slane %v790, %v797
        %v800 = vunpack.c.l.s4 1934713408
        %v801 = vunpack.c.0.s8 %v800
        %v802 = vlaneseq
        %v803 = vshrl.u32 %v802, 7
        %v804 = vsub.s32 %v801, %v803
        %v805 = vrot.slane %v791, %v804
        %v806 = vcombine.low %v782, %v798
        %v807 = vcombine.high %v782, %v798
        %v808 = vcombine.low %v789, %v805
        %v809 = vcombine.high %v789, %v805
        %v810 = vld [vmem:[%s242] sm:$0x1]
        %v812 = vlaneseq
        %v813 = vshrl.u32 %v812, 7
        %v814 = vsub.s32 0, %v813
        %v815 = vrot.slane %v810, %v814
        %vm817 = vcmask 64512
        %v819 = vsel %vm817, %v510, 0
        %v822 = vsel %vm817, %v658, 0
        %824 = vmatprep.subr.mxu0 0.0
        %825 = vmatpush1.xpose.msra.mxu0 0.0
        %826 = vmatprep.subr.mxu0 0.0
        %827 = vmatpush1.xpose.msra.mxu0 0.0
        %828 = vmatprep.subr.mxu0 0.0
        %829 = vmatpush1.xpose.msra.mxu0 0.0
        %830 = vmatprep.subr.mxu0 0.0
        %831 = vmatpush1.xpose.msra.mxu0 0.0
        %832 = vmatprep.subr.mxu0 0.0
        %833 = vmatpush1.xpose.msra.mxu0 0.0
        %834 = vmatprep.subr.mxu0 0.0
        %835 = vmatpush1.xpose.msra.mxu0 0.0
        %836 = vmatprep.subr.mxu0 0.0
        %837 = vmatpush1.xpose.msra.mxu0 0.0
        %838 = vmatprep.subr.mxu0 0.0
        %839 = vmatpush1.xpose.msra.mxu0 0.0
        %840 = vmatprep.subr.mxu0 0.0
        %841 = vmatpush1.xpose.msra.mxu0 0.0
        %842 = vmatprep.subr.mxu0 0.0
        %843 = vmatpush1.xpose.msra.mxu0 0.0
        %844 = vmatprep.subr.mxu0 0.0
        %845 = vmatpush1.xpose.msra.mxu0 0.0
        %846 = vmatprep.subr.mxu0 0.0
        %847 = vmatpush1.xpose.msra.mxu0 0.0
        %848 = vmatprep.subr.mxu0 0.0
        %849 = vmatpush1.xpose.msra.mxu0 0.0
        %850 = vmatprep.subr.mxu0 0.0
        %851 = vmatpush1.xpose.msra.mxu0 0.0
        %852 = vmatprep.subr.mxu0 0.0
        %853 = vmatpush1.xpose.msra.mxu0 0.0
        %854 = vmatprep.subr.mxu0 0.0
        %855 = vmatpush1.xpose.msra.mxu0 %v822
        %856 = vmatprep.subr.mxu0 0.0
        %857 = vmatpush2.xpose.msra.mxu0 0.0
        %858 = vmatprep.subr.mxu0 0.0
        %859 = vmatpush2.xpose.msra.mxu0 0.0
        %860 = vmatprep.subr.mxu0 0.0
        %861 = vmatpush2.xpose.msra.mxu0 0.0
        %862 = vmatprep.subr.mxu0 0.0
        %863 = vmatpush2.xpose.msra.mxu0 0.0
        %864 = vmatprep.subr.mxu0 0.0
        %865 = vmatpush2.xpose.msra.mxu0 0.0
        %866 = vmatprep.subr.mxu0 0.0
        %867 = vmatpush2.xpose.msra.mxu0 0.0
        %868 = vmatprep.subr.mxu0 0.0
        %869 = vmatpush2.xpose.msra.mxu0 0.0
        %870 = vmatprep.subr.mxu0 0.0
        %871 = vmatpush2.xpose.msra.mxu0 0.0
        %872 = vmatprep.subr.mxu0 0.0
        %873 = vmatpush2.xpose.msra.mxu0 0.0
        %874 = vmatprep.subr.mxu0 0.0
        %875 = vmatpush2.xpose.msra.mxu0 0.0
        %876 = vmatprep.subr.mxu0 0.0
        %877 = vmatpush2.xpose.msra.mxu0 0.0
        %878 = vmatprep.subr.mxu0 0.0
        %879 = vmatpush2.xpose.msra.mxu0 0.0
        %880 = vmatprep.subr.mxu0 0.0
        %881 = vmatpush2.xpose.msra.mxu0 0.0
        %882 = vmatprep.subr.mxu0 0.0
        %883 = vmatpush2.xpose.msra.mxu0 0.0
        %884 = vmatprep.subr.mxu0 0.0
        %885 = vmatpush2.xpose.msra.mxu0 0.0
        %886 = vmatprep.subr.mxu0 0.0
        %887 = vmatpush2.xpose.msra.mxu0 0.0
        %888 = vmatprep.mubr.f32.mxu0 0.0
        %889 = vmatmul.mubr.f32.gmra.mxu0 %v819
        %v890 = vpop.f32.mrf.mxu0
        %v891 = vadd.f32 %v815, %v890
        %v892 = vpop.f32.mrf.mxu0
        %893 = vdwg.mxu0
        %v895 = vsel %vm817, %v511, 0
        %v898 = vsel %vm817, %v659, 0
        %900 = vmatprep.subr.mxu0 0.0
        %901 = vmatpush1.xpose.msra.mxu0 0.0
        %902 = vmatprep.subr.mxu0 0.0
        %903 = vmatpush1.xpose.msra.mxu0 0.0
        %904 = vmatprep.subr.mxu0 0.0
        %905 = vmatpush1.xpose.msra.mxu0 0.0
        %906 = vmatprep.subr.mxu0 0.0
        %907 = vmatpush1.xpose.msra.mxu0 0.0
        %908 = vmatprep.subr.mxu0 0.0
        %909 = vmatpush1.xpose.msra.mxu0 0.0
        %910 = vmatprep.subr.mxu0 0.0
        %911 = vmatpush1.xpose.msra.mxu0 0.0
        %912 = vmatprep.subr.mxu0 0.0
        %913 = vmatpush1.xpose.msra.mxu0 0.0
        %914 = vmatprep.subr.mxu0 0.0
        %915 = vmatpush1.xpose.msra.mxu0 0.0
        %916 = vmatprep.subr.mxu0 0.0
        %917 = vmatpush1.xpose.msra.mxu0 0.0
        %918 = vmatprep.subr.mxu0 0.0
        %919 = vmatpush1.xpose.msra.mxu0 0.0
        %920 = vmatprep.subr.mxu0 0.0
        %921 = vmatpush1.xpose.msra.mxu0 0.0
        %922 = vmatprep.subr.mxu0 0.0
        %923 = vmatpush1.xpose.msra.mxu0 0.0
        %924 = vmatprep.subr.mxu0 0.0
        %925 = vmatpush1.xpose.msra.mxu0 0.0
        %926 = vmatprep.subr.mxu0 0.0
        %927 = vmatpush1.xpose.msra.mxu0 0.0
        %928 = vmatprep.subr.mxu0 0.0
        %929 = vmatpush1.xpose.msra.mxu0 0.0
        %930 = vmatprep.subr.mxu0 0.0
        %931 = vmatpush1.xpose.msra.mxu0 %v898
        %932 = vmatprep.subr.mxu0 0.0
        %933 = vmatpush2.xpose.msra.mxu0 0.0
        %934 = vmatprep.subr.mxu0 0.0
        %935 = vmatpush2.xpose.msra.mxu0 0.0
        %936 = vmatprep.subr.mxu0 0.0
        %937 = vmatpush2.xpose.msra.mxu0 0.0
        %938 = vmatprep.subr.mxu0 0.0
        %939 = vmatpush2.xpose.msra.mxu0 0.0
        %940 = vmatprep.subr.mxu0 0.0
        %941 = vmatpush2.xpose.msra.mxu0 0.0
        %942 = vmatprep.subr.mxu0 0.0
        %943 = vmatpush2.xpose.msra.mxu0 0.0
        %944 = vmatprep.subr.mxu0 0.0
        %945 = vmatpush2.xpose.msra.mxu0 0.0
        %946 = vmatprep.subr.mxu0 0.0
        %947 = vmatpush2.xpose.msra.mxu0 0.0
        %948 = vmatprep.subr.mxu0 0.0
        %949 = vmatpush2.xpose.msra.mxu0 0.0
        %950 = vmatprep.subr.mxu0 0.0
        %951 = vmatpush2.xpose.msra.mxu0 0.0
        %952 = vmatprep.subr.mxu0 0.0
        %953 = vmatpush2.xpose.msra.mxu0 0.0
        %954 = vmatprep.subr.mxu0 0.0
        %955 = vmatpush2.xpose.msra.mxu0 0.0
        %956 = vmatprep.subr.mxu0 0.0
        %957 = vmatpush2.xpose.msra.mxu0 0.0
        %958 = vmatprep.subr.mxu0 0.0
        %959 = vmatpush2.xpose.msra.mxu0 0.0
        %960 = vmatprep.subr.mxu0 0.0
        %961 = vmatpush2.xpose.msra.mxu0 0.0
        %962 = vmatprep.subr.mxu0 0.0
        %963 = vmatpush2.xpose.msra.mxu0 0.0
        %964 = vmatprep.mubr.f32.mxu0 0.0
        %965 = vmatmul.mubr.f32.gmra.mxu0 %v895
        %v966 = vpop.f32.mrf.mxu0
        %v967 = vadd.f32 %v815, %v966
        %v968 = vpop.f32.mrf.mxu0
        %969 = vdwg.mxu0
        %v971 = vsel %vm817, %v512, 0
        %v974 = vsel %vm817, %v660, 0
        %976 = vmatprep.subr.mxu0 0.0
        %977 = vmatpush1.xpose.msra.mxu0 0.0
        %978 = vmatprep.subr.mxu0 0.0
        %979 = vmatpush1.xpose.msra.mxu0 0.0
        %980 = vmatprep.subr.mxu0 0.0
        %981 = vmatpush1.xpose.msra.mxu0 0.0
        %982 = vmatprep.subr.mxu0 0.0
        %983 = vmatpush1.xpose.msra.mxu0 0.0
        %984 = vmatprep.subr.mxu0 0.0
        %985 = vmatpush1.xpose.msra.mxu0 0.0
        %986 = vmatprep.subr.mxu0 0.0
        %987 = vmatpush1.xpose.msra.mxu0 0.0
        %988 = vmatprep.subr.mxu0 0.0
        %989 = vmatpush1.xpose.msra.mxu0 0.0
        %990 = vmatprep.subr.mxu0 0.0
        %991 = vmatpush1.xpose.msra.mxu0 0.0
        %992 = vmatprep.subr.mxu0 0.0
        %993 = vmatpush1.xpose.msra.mxu0 0.0
        %994 = vmatprep.subr.mxu0 0.0
        %995 = vmatpush1.xpose.msra.mxu0 0.0
        %996 = vmatprep.subr.mxu0 0.0
        %997 = vmatpush1.xpose.msra.mxu0 0.0
        %998 = vmatprep.subr.mxu0 0.0
        %999 = vmatpush1.xpose.msra.mxu0 0.0
        %1000 = vmatprep.subr.mxu0 0.0
        %1001 = vmatpush1.xpose.msra.mxu0 0.0
        %1002 = vmatprep.subr.mxu0 0.0
        %1003 = vmatpush1.xpose.msra.mxu0 0.0
        %1004 = vmatprep.subr.mxu0 0.0
        %1005 = vmatpush1.xpose.msra.mxu0 0.0
        %1006 = vmatprep.subr.mxu0 0.0
        %1007 = vmatpush1.xpose.msra.mxu0 %v974
        %1008 = vmatprep.subr.mxu0 0.0
        %1009 = vmatpush2.xpose.msra.mxu0 0.0
        %1010 = vmatprep.subr.mxu0 0.0
        %1011 = vmatpush2.xpose.msra.mxu0 0.0
        %1012 = vmatprep.subr.mxu0 0.0
        %1013 = vmatpush2.xpose.msra.mxu0 0.0
        %1014 = vmatprep.subr.mxu0 0.0
        %1015 = vmatpush2.xpose.msra.mxu0 0.0
        %1016 = vmatprep.subr.mxu0 0.0
        %1017 = vmatpush2.xpose.msra.mxu0 0.0
        %1018 = vmatprep.subr.mxu0 0.0
        %1019 = vmatpush2.xpose.msra.mxu0 0.0
        %1020 = vmatprep.subr.mxu0 0.0
        %1021 = vmatpush2.xpose.msra.mxu0 0.0
        %1022 = vmatprep.subr.mxu0 0.0
        %1023 = vmatpush2.xpose.msra.mxu0 0.0
        %1024 = vmatprep.subr.mxu0 0.0
        %1025 = vmatpush2.xpose.msra.mxu0 0.0
        %1026 = vmatprep.subr.mxu0 0.0
        %1027 = vmatpush2.xpose.msra.mxu0 0.0
        %1028 = vmatprep.subr.mxu0 0.0
        %1029 = vmatpush2.xpose.msra.mxu0 0.0
        %1030 = vmatprep.subr.mxu0 0.0
        %1031 = vmatpush2.xpose.msra.mxu0 0.0
        %1032 = vmatprep.subr.mxu0 0.0
        %1033 = vmatpush2.xpose.msra.mxu0 0.0
        %1034 = vmatprep.subr.mxu0 0.0
        %1035 = vmatpush2.xpose.msra.mxu0 0.0
        %1036 = vmatprep.subr.mxu0 0.0
        %1037 = vmatpush2.xpose.msra.mxu0 0.0
        %1038 = vmatprep.subr.mxu0 0.0
        %1039 = vmatpush2.xpose.msra.mxu0 0.0
        %1040 = vmatprep.mubr.f32.mxu0 0.0
        %1041 = vmatmul.mubr.f32.gmra.mxu0 %v971
        %v1042 = vpop.f32.mrf.mxu0
        %v1043 = vadd.f32 %v815, %v1042
        %v1044 = vpop.f32.mrf.mxu0
        %1045 = vdwg.mxu0
        %v1047 = vsel %vm817, %v513, 0
        %v1050 = vsel %vm817, %v661, 0
        %1052 = vmatprep.subr.mxu0 0.0
        %1053 = vmatpush1.xpose.msra.mxu0 0.0
        %1054 = vmatprep.subr.mxu0 0.0
        %1055 = vmatpush1.xpose.msra.mxu0 0.0
        %1056 = vmatprep.subr.mxu0 0.0
        %1057 = vmatpush1.xpose.msra.mxu0 0.0
        %1058 = vmatprep.subr.mxu0 0.0
        %1059 = vmatpush1.xpose.msra.mxu0 0.0
        %1060 = vmatprep.subr.mxu0 0.0
        %1061 = vmatpush1.xpose.msra.mxu0 0.0
        %1062 = vmatprep.subr.mxu0 0.0
        %1063 = vmatpush1.xpose.msra.mxu0 0.0
        %1064 = vmatprep.subr.mxu0 0.0
        %1065 = vmatpush1.xpose.msra.mxu0 0.0
        %1066 = vmatprep.subr.mxu0 0.0
        %1067 = vmatpush1.xpose.msra.mxu0 0.0
        %1068 = vmatprep.subr.mxu0 0.0
        %1069 = vmatpush1.xpose.msra.mxu0 0.0
        %1070 = vmatprep.subr.mxu0 0.0
        %1071 = vmatpush1.xpose.msra.mxu0 0.0
        %1072 = vmatprep.subr.mxu0 0.0
        %1073 = vmatpush1.xpose.msra.mxu0 0.0
        %1074 = vmatprep.subr.mxu0 0.0
        %1075 = vmatpush1.xpose.msra.mxu0 0.0
        %1076 = vmatprep.subr.mxu0 0.0
        %1077 = vmatpush1.xpose.msra.mxu0 0.0
        %1078 = vmatprep.subr.mxu0 0.0
        %1079 = vmatpush1.xpose.msra.mxu0 0.0
        %1080 = vmatprep.subr.mxu0 0.0
        %1081 = vmatpush1.xpose.msra.mxu0 0.0
        %1082 = vmatprep.subr.mxu0 0.0
        %1083 = vmatpush1.xpose.msra.mxu0 %v1050
        %1084 = vmatprep.subr.mxu0 0.0
        %1085 = vmatpush2.xpose.msra.mxu0 0.0
        %1086 = vmatprep.subr.mxu0 0.0
        %1087 = vmatpush2.xpose.msra.mxu0 0.0
        %1088 = vmatprep.subr.mxu0 0.0
        %1089 = vmatpush2.xpose.msra.mxu0 0.0
        %1090 = vmatprep.subr.mxu0 0.0
        %1091 = vmatpush2.xpose.msra.mxu0 0.0
        %1092 = vmatprep.subr.mxu0 0.0
        %1093 = vmatpush2.xpose.msra.mxu0 0.0
        %1094 = vmatprep.subr.mxu0 0.0
        %1095 = vmatpush2.xpose.msra.mxu0 0.0
        %1096 = vmatprep.subr.mxu0 0.0
        %1097 = vmatpush2.xpose.msra.mxu0 0.0
        %1098 = vmatprep.subr.mxu0 0.0
        %1099 = vmatpush2.xpose.msra.mxu0 0.0
        %1100 = vmatprep.subr.mxu0 0.0
        %1101 = vmatpush2.xpose.msra.mxu0 0.0
        %1102 = vmatprep.subr.mxu0 0.0
        %1103 = vmatpush2.xpose.msra.mxu0 0.0
        %1104 = vmatprep.subr.mxu0 0.0
        %1105 = vmatpush2.xpose.msra.mxu0 0.0
        %1106 = vmatprep.subr.mxu0 0.0
        %1107 = vmatpush2.xpose.msra.mxu0 0.0
        %1108 = vmatprep.subr.mxu0 0.0
        %1109 = vmatpush2.xpose.msra.mxu0 0.0
        %1110 = vmatprep.subr.mxu0 0.0
        %1111 = vmatpush2.xpose.msra.mxu0 0.0
        %1112 = vmatprep.subr.mxu0 0.0
        %1113 = vmatpush2.xpose.msra.mxu0 0.0
        %1114 = vmatprep.subr.mxu0 0.0
        %1115 = vmatpush2.xpose.msra.mxu0 0.0
        %1116 = vmatprep.mubr.f32.mxu0 0.0
        %1117 = vmatmul.mubr.f32.gmra.mxu0 %v1047
        %v1118 = vpop.f32.mrf.mxu0
        %v1119 = vadd.f32 %v815, %v1118
        %v1120 = vpop.f32.mrf.mxu0
        %1121 = vdwg.mxu0
        %v1122 = vsel %vm817, %v891, -inf
        %1123 = vmax.xlane.f32.xlu0 %v1122
        %v1124 = vpop.xlane.xlu0 %1123
        %v1125 = vsel %vm817, %v967, -inf
        %1126 = vmax.xlane.f32.xlu0 %v1125
        %v1127 = vpop.xlane.xlu0 %1126
        %v1128 = vsel %vm817, %v1043, -inf
        %1129 = vmax.xlane.f32.xlu0 %v1128
        %v1130 = vpop.xlane.xlu0 %1129
        %v1131 = vsel %vm817, %v1119, -inf
        %1132 = vmax.xlane.f32.xlu0 %v1131
        %v1133 = vpop.xlane.xlu0 %1132
        %v1134 = vsub.f32 %v891, %v1124
        %v1135 = vsub.f32 %v967, %v1127
        %v1136 = vsub.f32 %v1043, %v1130
        %v1137 = vsub.f32 %v1119, %v1133
        %v1138 = vmul.f32 %v1134, 1.442695
        %v1139 = vpow.pop %v1138
        %v1140 = vmul.f32 %v1135, 1.442695
        %v1141 = vpow.pop %v1140
        %v1142 = vmul.f32 %v1136, 1.442695
        %v1143 = vpow.pop %v1142
        %v1144 = vmul.f32 %v1137, 1.442695
        %v1145 = vpow.pop %v1144
        %v1146 = vsel %vm817, %v1139, 0.0
        %1147 = vadd.xlane.f32.xlu0 %v1146
        %v1148 = vpop.xlane.xlu0 %1147
        %v1149 = vsel %vm817, %v1141, 0.0
        %1150 = vadd.xlane.f32.xlu0 %v1149
        %v1151 = vpop.xlane.xlu0 %1150
        %v1152 = vsel %vm817, %v1143, 0.0
        %1153 = vadd.xlane.f32.xlu0 %v1152
        %v1154 = vpop.xlane.xlu0 %1153
        %v1155 = vsel %vm817, %v1145, 0.0
        %1156 = vadd.xlane.f32.xlu0 %v1155
        %v1157 = vpop.xlane.xlu0 %1156
        %v1159 = vsel %vm817, %v1139, 0
        %1161 = vmatprep.subr.mxu0 0.0
        %1162 = vmatpush1.msra.mxu0 0.0
        %1163 = vmatprep.subr.mxu0 0.0
        %1164 = vmatpush1.msra.mxu0 0.0
        %1165 = vmatprep.subr.mxu0 0.0
        %1166 = vmatpush1.msra.mxu0 0.0
        %1167 = vmatprep.subr.mxu0 0.0
        %1168 = vmatpush1.msra.mxu0 0.0
        %1169 = vmatprep.subr.mxu0 0.0
        %1170 = vmatpush1.msra.mxu0 0.0
        %1171 = vmatprep.subr.mxu0 0.0
        %1172 = vmatpush1.msra.mxu0 0.0
        %1173 = vmatprep.subr.mxu0 0.0
        %1174 = vmatpush1.msra.mxu0 0.0
        %1175 = vmatprep.subr.mxu0 0.0
        %1176 = vmatpush1.msra.mxu0 0.0
        %1177 = vmatprep.subr.mxu0 0.0
        %1178 = vmatpush1.msra.mxu0 0.0
        %1179 = vmatprep.subr.mxu0 0.0
        %1180 = vmatpush1.msra.mxu0 0.0
        %1181 = vmatprep.subr.mxu0 0.0
        %1182 = vmatpush1.msra.mxu0 0.0
        %1183 = vmatprep.subr.mxu0 0.0
        %1184 = vmatpush1.msra.mxu0 0.0
        %1185 = vmatprep.subr.mxu0 0.0
        %1186 = vmatpush1.msra.mxu0 0.0
        %1187 = vmatprep.subr.mxu0 0.0
        %1188 = vmatpush1.msra.mxu0 0.0
        %1189 = vmatprep.subr.mxu0 0.0
        %1190 = vmatpush1.msra.mxu0 0.0
        %1191 = vmatprep.subr.mxu0 0.0
        %1192 = vmatpush1.msra.mxu0 %v806
        %1193 = vmatprep.subr.mxu0 0.0
        %1194 = vmatpush2.msra.mxu0 0.0
        %1195 = vmatprep.subr.mxu0 0.0
        %1196 = vmatpush2.msra.mxu0 0.0
        %1197 = vmatprep.subr.mxu0 0.0
        %1198 = vmatpush2.msra.mxu0 0.0
        %1199 = vmatprep.subr.mxu0 0.0
        %1200 = vmatpush2.msra.mxu0 0.0
        %1201 = vmatprep.subr.mxu0 0.0
        %1202 = vmatpush2.msra.mxu0 0.0
        %1203 = vmatprep.subr.mxu0 0.0
        %1204 = vmatpush2.msra.mxu0 0.0
        %1205 = vmatprep.subr.mxu0 0.0
        %1206 = vmatpush2.msra.mxu0 0.0
        %1207 = vmatprep.subr.mxu0 0.0
        %1208 = vmatpush2.msra.mxu0 0.0
        %1209 = vmatprep.subr.mxu0 0.0
        %1210 = vmatpush2.msra.mxu0 0.0
        %1211 = vmatprep.subr.mxu0 0.0
        %1212 = vmatpush2.msra.mxu0 0.0
        %1213 = vmatprep.subr.mxu0 0.0
        %1214 = vmatpush2.msra.mxu0 0.0
        %1215 = vmatprep.subr.mxu0 0.0
        %1216 = vmatpush2.msra.mxu0 0.0
        %1217 = vmatprep.subr.mxu0 0.0
        %1218 = vmatpush2.msra.mxu0 0.0
        %1219 = vmatprep.subr.mxu0 0.0
        %1220 = vmatpush2.msra.mxu0 0.0
        %1221 = vmatprep.subr.mxu0 0.0
        %1222 = vmatpush2.msra.mxu0 0.0
        %1223 = vmatprep.subr.mxu0 0.0
        %1224 = vmatpush2.msra.mxu0 0.0
        %1225 = vmatprep.mubr.f32.mxu0 0.0
        %1226 = vmatmul.mubr.f32.gmra.mxu0 %v1159
        %v1227 = vpop.f32.mrf.mxu0
        %v1228 = vadd.f32 0.0, %v1227
        %v1229 = vpop.f32.mrf.mxu0
        %1230 = vdwg.mxu0
        %v1232 = vsel %vm817, %v1141, 0
        %1234 = vmatprep.subr.mxu0 0.0
        %1235 = vmatpush1.msra.mxu0 0.0
        %1236 = vmatprep.subr.mxu0 0.0
        %1237 = vmatpush1.msra.mxu0 0.0
        %1238 = vmatprep.subr.mxu0 0.0
        %1239 = vmatpush1.msra.mxu0 0.0
        %1240 = vmatprep.subr.mxu0 0.0
        %1241 = vmatpush1.msra.mxu0 0.0
        %1242 = vmatprep.subr.mxu0 0.0
        %1243 = vmatpush1.msra.mxu0 0.0
        %1244 = vmatprep.subr.mxu0 0.0
        %1245 = vmatpush1.msra.mxu0 0.0
        %1246 = vmatprep.subr.mxu0 0.0
        %1247 = vmatpush1.msra.mxu0 0.0
        %1248 = vmatprep.subr.mxu0 0.0
        %1249 = vmatpush1.msra.mxu0 0.0
        %1250 = vmatprep.subr.mxu0 0.0
        %1251 = vmatpush1.msra.mxu0 0.0
        %1252 = vmatprep.subr.mxu0 0.0
        %1253 = vmatpush1.msra.mxu0 0.0
        %1254 = vmatprep.subr.mxu0 0.0
        %1255 = vmatpush1.msra.mxu0 0.0
        %1256 = vmatprep.subr.mxu0 0.0
        %1257 = vmatpush1.msra.mxu0 0.0
        %1258 = vmatprep.subr.mxu0 0.0
        %1259 = vmatpush1.msra.mxu0 0.0
        %1260 = vmatprep.subr.mxu0 0.0
        %1261 = vmatpush1.msra.mxu0 0.0
        %1262 = vmatprep.subr.mxu0 0.0
        %1263 = vmatpush1.msra.mxu0 0.0
        %1264 = vmatprep.subr.mxu0 0.0
        %1265 = vmatpush1.msra.mxu0 %v807
        %1266 = vmatprep.subr.mxu0 0.0
        %1267 = vmatpush2.msra.mxu0 0.0
        %1268 = vmatprep.subr.mxu0 0.0
        %1269 = vmatpush2.msra.mxu0 0.0
        %1270 = vmatprep.subr.mxu0 0.0
        %1271 = vmatpush2.msra.mxu0 0.0
        %1272 = vmatprep.subr.mxu0 0.0
        %1273 = vmatpush2.msra.mxu0 0.0
        %1274 = vmatprep.subr.mxu0 0.0
        %1275 = vmatpush2.msra.mxu0 0.0
        %1276 = vmatprep.subr.mxu0 0.0
        %1277 = vmatpush2.msra.mxu0 0.0
        %1278 = vmatprep.subr.mxu0 0.0
        %1279 = vmatpush2.msra.mxu0 0.0
        %1280 = vmatprep.subr.mxu0 0.0
        %1281 = vmatpush2.msra.mxu0 0.0
        %1282 = vmatprep.subr.mxu0 0.0
        %1283 = vmatpush2.msra.mxu0 0.0
        %1284 = vmatprep.subr.mxu0 0.0
        %1285 = vmatpush2.msra.mxu0 0.0
        %1286 = vmatprep.subr.mxu0 0.0
        %1287 = vmatpush2.msra.mxu0 0.0
        %1288 = vmatprep.subr.mxu0 0.0
        %1289 = vmatpush2.msra.mxu0 0.0
        %1290 = vmatprep.subr.mxu0 0.0
        %1291 = vmatpush2.msra.mxu0 0.0
        %1292 = vmatprep.subr.mxu0 0.0
        %1293 = vmatpush2.msra.mxu0 0.0
        %1294 = vmatprep.subr.mxu0 0.0
        %1295 = vmatpush2.msra.mxu0 0.0
        %1296 = vmatprep.subr.mxu0 0.0
        %1297 = vmatpush2.msra.mxu0 0.0
        %1298 = vmatprep.mubr.f32.mxu0 0.0
        %1299 = vmatmul.mubr.f32.gmra.mxu0 %v1232
        %v1300 = vpop.f32.mrf.mxu0
        %v1301 = vadd.f32 0.0, %v1300
        %v1302 = vpop.f32.mrf.mxu0
        %1303 = vdwg.mxu0
        %v1305 = vsel %vm817, %v1143, 0
        %1307 = vmatprep.subr.mxu0 0.0
        %1308 = vmatpush1.msra.mxu0 0.0
        %1309 = vmatprep.subr.mxu0 0.0
        %1310 = vmatpush1.msra.mxu0 0.0
        %1311 = vmatprep.subr.mxu0 0.0
        %1312 = vmatpush1.msra.mxu0 0.0
        %1313 = vmatprep.subr.mxu0 0.0
        %1314 = vmatpush1.msra.mxu0 0.0
        %1315 = vmatprep.subr.mxu0 0.0
        %1316 = vmatpush1.msra.mxu0 0.0
        %1317 = vmatprep.subr.mxu0 0.0
        %1318 = vmatpush1.msra.mxu0 0.0
        %1319 = vmatprep.subr.mxu0 0.0
        %1320 = vmatpush1.msra.mxu0 0.0
        %1321 = vmatprep.subr.mxu0 0.0
        %1322 = vmatpush1.msra.mxu0 0.0
        %1323 = vmatprep.subr.mxu0 0.0
        %1324 = vmatpush1.msra.mxu0 0.0
        %1325 = vmatprep.subr.mxu0 0.0
        %1326 = vmatpush1.msra.mxu0 0.0
        %1327 = vmatprep.subr.mxu0 0.0
        %1328 = vmatpush1.msra.mxu0 0.0
        %1329 = vmatprep.subr.mxu0 0.0
        %1330 = vmatpush1.msra.mxu0 0.0
        %1331 = vmatprep.subr.mxu0 0.0
        %1332 = vmatpush1.msra.mxu0 0.0
        %1333 = vmatprep.subr.mxu0 0.0
        %1334 = vmatpush1.msra.mxu0 0.0
        %1335 = vmatprep.subr.mxu0 0.0
        %1336 = vmatpush1.msra.mxu0 0.0
        %1337 = vmatprep.subr.mxu0 0.0
        %1338 = vmatpush1.msra.mxu0 %v808
        %1339 = vmatprep.subr.mxu0 0.0
        %1340 = vmatpush2.msra.mxu0 0.0
        %1341 = vmatprep.subr.mxu0 0.0
        %1342 = vmatpush2.msra.mxu0 0.0
        %1343 = vmatprep.subr.mxu0 0.0
        %1344 = vmatpush2.msra.mxu0 0.0
        %1345 = vmatprep.subr.mxu0 0.0
        %1346 = vmatpush2.msra.mxu0 0.0
        %1347 = vmatprep.subr.mxu0 0.0
        %1348 = vmatpush2.msra.mxu0 0.0
        %1349 = vmatprep.subr.mxu0 0.0
        %1350 = vmatpush2.msra.mxu0 0.0
        %1351 = vmatprep.subr.mxu0 0.0
        %1352 = vmatpush2.msra.mxu0 0.0
        %1353 = vmatprep.subr.mxu0 0.0
        %1354 = vmatpush2.msra.mxu0 0.0
        %1355 = vmatprep.subr.mxu0 0.0
        %1356 = vmatpush2.msra.mxu0 0.0
        %1357 = vmatprep.subr.mxu0 0.0
        %1358 = vmatpush2.msra.mxu0 0.0
        %1359 = vmatprep.subr.mxu0 0.0
        %1360 = vmatpush2.msra.mxu0 0.0
        %1361 = vmatprep.subr.mxu0 0.0
        %1362 = vmatpush2.msra.mxu0 0.0
        %1363 = vmatprep.subr.mxu0 0.0
        %1364 = vmatpush2.msra.mxu0 0.0
        %1365 = vmatprep.subr.mxu0 0.0
        %1366 = vmatpush2.msra.mxu0 0.0
        %1367 = vmatprep.subr.mxu0 0.0
        %1368 = vmatpush2.msra.mxu0 0.0
        %1369 = vmatprep.subr.mxu0 0.0
        %1370 = vmatpush2.msra.mxu0 0.0
        %1371 = vmatprep.mubr.f32.mxu0 0.0
        %1372 = vmatmul.mubr.f32.gmra.mxu0 %v1305
        %v1373 = vpop.f32.mrf.mxu0
        %v1374 = vadd.f32 0.0, %v1373
        %v1375 = vpop.f32.mrf.mxu0
        %1376 = vdwg.mxu0
        %v1378 = vsel %vm817, %v1145, 0
        %1380 = vmatprep.subr.mxu0 0.0
        %1381 = vmatpush1.msra.mxu0 0.0
        %1382 = vmatprep.subr.mxu0 0.0
        %1383 = vmatpush1.msra.mxu0 0.0
        %1384 = vmatprep.subr.mxu0 0.0
        %1385 = vmatpush1.msra.mxu0 0.0
        %1386 = vmatprep.subr.mxu0 0.0
        %1387 = vmatpush1.msra.mxu0 0.0
        %1388 = vmatprep.subr.mxu0 0.0
        %1389 = vmatpush1.msra.mxu0 0.0
        %1390 = vmatprep.subr.mxu0 0.0
        %1391 = vmatpush1.msra.mxu0 0.0
        %1392 = vmatprep.subr.mxu0 0.0
        %1393 = vmatpush1.msra.mxu0 0.0
        %1394 = vmatprep.subr.mxu0 0.0
        %1395 = vmatpush1.msra.mxu0 0.0
        %1396 = vmatprep.subr.mxu0 0.0
        %1397 = vmatpush1.msra.mxu0 0.0
        %1398 = vmatprep.subr.mxu0 0.0
        %1399 = vmatpush1.msra.mxu0 0.0
        %1400 = vmatprep.subr.mxu0 0.0
        %1401 = vmatpush1.msra.mxu0 0.0
        %1402 = vmatprep.subr.mxu0 0.0
        %1403 = vmatpush1.msra.mxu0 0.0
        %1404 = vmatprep.subr.mxu0 0.0
        %1405 = vmatpush1.msra.mxu0 0.0
        %1406 = vmatprep.subr.mxu0 0.0
        %1407 = vmatpush1.msra.mxu0 0.0
        %1408 = vmatprep.subr.mxu0 0.0
        %1409 = vmatpush1.msra.mxu0 0.0
        %1410 = vmatprep.subr.mxu0 0.0
        %1411 = vmatpush1.msra.mxu0 %v809
        %1412 = vmatprep.subr.mxu0 0.0
        %1413 = vmatpush2.msra.mxu0 0.0
        %1414 = vmatprep.subr.mxu0 0.0
        %1415 = vmatpush2.msra.mxu0 0.0
        %1416 = vmatprep.subr.mxu0 0.0
        %1417 = vmatpush2.msra.mxu0 0.0
        %1418 = vmatprep.subr.mxu0 0.0
        %1419 = vmatpush2.msra.mxu0 0.0
        %1420 = vmatprep.subr.mxu0 0.0
        %1421 = vmatpush2.msra.mxu0 0.0
        %1422 = vmatprep.subr.mxu0 0.0
        %1423 = vmatpush2.msra.mxu0 0.0
        %1424 = vmatprep.subr.mxu0 0.0
        %1425 = vmatpush2.msra.mxu0 0.0
        %1426 = vmatprep.subr.mxu0 0.0
        %1427 = vmatpush2.msra.mxu0 0.0
        %1428 = vmatprep.subr.mxu0 0.0
        %1429 = vmatpush2.msra.mxu0 0.0
        %1430 = vmatprep.subr.mxu0 0.0
        %1431 = vmatpush2.msra.mxu0 0.0
        %1432 = vmatprep.subr.mxu0 0.0
        %1433 = vmatpush2.msra.mxu0 0.0
        %1434 = vmatprep.subr.mxu0 0.0
        %1435 = vmatpush2.msra.mxu0 0.0
        %1436 = vmatprep.subr.mxu0 0.0
        %1437 = vmatpush2.msra.mxu0 0.0
        %1438 = vmatprep.subr.mxu0 0.0
        %1439 = vmatpush2.msra.mxu0 0.0
        %1440 = vmatprep.subr.mxu0 0.0
        %1441 = vmatpush2.msra.mxu0 0.0
        %1442 = vmatprep.subr.mxu0 0.0
        %1443 = vmatpush2.msra.mxu0 0.0
        %1444 = vmatprep.mubr.f32.mxu0 0.0
        %1445 = vmatmul.mubr.f32.gmra.mxu0 %v1378
        %v1446 = vpop.f32.mrf.mxu0
        %v1447 = vadd.f32 0.0, %v1446
        %v1448 = vpop.f32.mrf.mxu0
        %1449 = vdwg.mxu0
        %v1450 = vrcp.pop %v1148
        %v1451 = vrcp.pop %v1151
        %v1452 = vrcp.pop %v1154
        %v1453 = vrcp.pop %v1157
        %v1454 = vmul.f32 %v1228, %v1450
        %v1455 = vmul.f32 %v1301, %v1451
        %v1456 = vmul.f32 %v1374, %v1452
        %v1457 = vmul.f32 %v1447, %v1453
        %v1458 = vcombine.low %v1454, %v1456
        %v1459 = vcombine.high %v1454, %v1456
        %v1461 = vunpack.c.l.s4 1983009808
        %v1462 = vunpack.c.0.s8 %v1461
        %v1463 = vlaneseq
        %v1464 = vshrl.u32 %v1463, 7
        %v1465 = vsub.s32 %v1462, %v1464
        %v1466 = vrot.slane %v1458, %v1465
        %v1468 = vunpack.c.l.s4 1983009808
        %v1469 = vunpack.c.0.s8 %v1468
        %v1470 = vlaneseq
        %v1471 = vshrl.u32 %v1470, 7
        %v1472 = vsub.s32 %v1469, %v1471
        %v1473 = vrot.slane %v1459, %v1472
        %v1474 = vcombine.low %v1455, %v1457
        %v1475 = vcombine.high %v1455, %v1457
        %v1477 = vunpack.c.l.s4 1983009808
        %v1478 = vunpack.c.0.s8 %v1477
        %v1479 = vlaneseq
        %v1480 = vshrl.u32 %v1479, 7
        %v1481 = vsub.s32 %v1478, %v1480
        %v1482 = vrot.slane %v1474, %v1481
        %v1484 = vunpack.c.l.s4 1983009808
        %v1485 = vunpack.c.0.s8 %v1484
        %v1486 = vlaneseq
        %v1487 = vshrl.u32 %v1486, 7
        %v1488 = vsub.s32 %v1485, %v1487
        %v1489 = vrot.slane %v1475, %v1488
        %v1490 = vcombine.low %v1466, %v1482
        %v1491 = vcombine.high %v1466, %v1482
        %v1493 = vunpack.c.l.s4 1934713408
        %v1494 = vunpack.c.0.s8 %v1493
        %v1495 = vlaneseq
        %v1496 = vshrl.u32 %v1495, 7
        %v1497 = vsub.s32 %v1494, %v1496
        %v1498 = vrot.slane %v1490, %v1497
        %v1500 = vunpack.c.l.s4 1934713408
        %v1501 = vunpack.c.0.s8 %v1500
        %v1502 = vlaneseq
        %v1503 = vshrl.u32 %v1502, 7
        %v1504 = vsub.s32 %v1501, %v1503
        %v1505 = vrot.slane %v1491, %v1504
        %v1506 = vcombine.low %v1473, %v1489
        %v1507 = vcombine.high %v1473, %v1489
        %v1509 = vunpack.c.l.s4 1934713408
        %v1510 = vunpack.c.0.s8 %v1509
        %v1511 = vlaneseq
        %v1512 = vshrl.u32 %v1511, 7
        %v1513 = vsub.s32 %v1510, %v1512
        %v1514 = vrot.slane %v1506, %v1513
        %v1516 = vunpack.c.l.s4 1934713408
        %v1517 = vunpack.c.0.s8 %v1516
        %v1518 = vlaneseq
        %v1519 = vshrl.u32 %v1518, 7
        %v1520 = vsub.s32 %v1517, %v1519
        %v1521 = vrot.slane %v1507, %v1520
        %v1522 = vcombine.high %v1498, 0.0
        %v1523 = vcombine.high %v1505, 0.0
        %v1524 = vcombine.high %v1514, 0.0
        %v1525 = vcombine.high %v1521, 0.0
        %v1526 = vcombine.low %v1498, %v1505
        %v1528 = vunpack.c.l.s4 1983009808
        %v1529 = vunpack.c.0.s8 %v1528
        %v1530 = vlaneseq
        %v1531 = vshrl.u32 %v1530, 7
        %v1532 = vsub.s32 %v1529, %v1531
        %v1533 = vrot.slane %v1526, %v1532
        %v1534 = vcombine.low %v1522, %v1523
        %v1536 = vunpack.c.l.s4 1983009808
        %v1537 = vunpack.c.0.s8 %v1536
        %v1538 = vlaneseq
        %v1539 = vshrl.u32 %v1538, 7
        %v1540 = vsub.s32 %v1537, %v1539
        %v1541 = vrot.slane %v1534, %v1540
        %v1542 = vcombine.low %v1514, %v1521
        %v1544 = vunpack.c.l.s4 1983009808
        %v1545 = vunpack.c.0.s8 %v1544
        %v1546 = vlaneseq
        %v1547 = vshrl.u32 %v1546, 7
        %v1548 = vsub.s32 %v1545, %v1547
        %v1549 = vrot.slane %v1542, %v1548
        %v1550 = vcombine.low %v1524, %v1525
        %v1552 = vunpack.c.l.s4 1983009808
        %v1553 = vunpack.c.0.s8 %v1552
        %v1554 = vlaneseq
        %v1555 = vshrl.u32 %v1554, 7
        %v1556 = vsub.s32 %v1553, %v1555
        %v1557 = vrot.slane %v1550, %v1556
        %v1558 = vcombine.low %v1533, %v1541
        %v1559 = vcombine.high %v1533, %v1541
        %v1561 = vunpack.c.l.s4 1934713408
        %v1562 = vunpack.c.0.s8 %v1561
        %v1563 = vlaneseq
        %v1564 = vshrl.u32 %v1563, 7
        %v1565 = vsub.s32 %v1562, %v1564
        %v1566 = vrot.slane %v1558, %v1565
        %v1568 = vunpack.c.l.s4 1934713408
        %v1569 = vunpack.c.0.s8 %v1568
        %v1570 = vlaneseq
        %v1571 = vshrl.u32 %v1570, 7
        %v1572 = vsub.s32 %v1569, %v1571
        %v1573 = vrot.slane %v1559, %v1572
        %v1574 = vcombine.low %v1549, %v1557
        %v1575 = vcombine.high %v1549, %v1557
        %v1577 = vunpack.c.l.s4 1934713408
        %v1578 = vunpack.c.0.s8 %v1577
        %v1579 = vlaneseq
        %v1580 = vshrl.u32 %v1579, 7
        %v1581 = vsub.s32 %v1578, %v1580
        %v1582 = vrot.slane %v1574, %v1581
        %v1584 = vunpack.c.l.s4 1934713408
        %v1585 = vunpack.c.0.s8 %v1584
        %v1586 = vlaneseq
        %v1587 = vshrl.u32 %v1586, 7
        %v1588 = vsub.s32 %v1585, %v1587
        %v1589 = vrot.slane %v1575, %v1588
        %v1590 = vcombine.low %v1566, %v1582
        %v1591 = vcombine.high %v1566, %v1582
        %v1592 = vcombine.low %v1573, %v1589
        %v1593 = vcombine.high %v1573, %v1589
        %1595 = vrot.lane.b32.xlu0 %v1591, 8
        %v1596 = vpop.permute.xlu0 %1595
        %1599 = vrot.lane.b32.xlu0 %v1592, 16
        %v1600 = vpop.permute.xlu0 %1599
        %1603 = vrot.lane.b32.xlu0 %v1593, 24
        %v1604 = vpop.permute.xlu0 %1603
        %v1606 = vsel %vm817, %v1590, %v1596
        %vm1607 = vcmask 130048
        %v1608 = vsel %vm1607, %v1606, %v1600
        %vm1609 = vcmask 195584
        %v1610 = vsel %vm1609, %v1608, %v1604
        %vm1611 = vcmask 261120
        %1612 = vst.msk [vmem:[%s274] sm:$0xff] %vm1611, %v1610
        %s1613 = sand.u32 %s140, 1
        %s1614 = scalar_lea.sflag [#allocation5], %s1613
        %s1615 = sand.u32 %s140, 1
        %s1616 = smul.addr %s1615, 8
        %s1617 = scalar_lea.vmem [#allocation9], %s1616
        // Predicated region
        $region53: #{tpu_custom_call.1} parent=35 // pred_check
          %p1618 = pneg %p150
        $region54: #{tpu_custom_call.1} parent=35 // pred_check_branch
          %1620 = sbr.rel (%p1618) target = $region56
        $region55: #{tpu_custom_call.1} parent=35 // pred_region
          %s1622 = ssub.s32 128, 128
          %1623 = vsyncadd %s1614, %s1622
          %s1624 = sadd.s32 %s29, %s28
          %s1625 = smul.addr %s1624, 128
          %s1626 = scalar_lea.hbm %s4, %s1625
          %s1628 = sshll.u32 %s1617, 4
          %s1629 = int_to_ptr.vmem [resolvable:$true] %s1628
          %1631 = dma.vmem_to_hbm [thread:$0]  %s1629, 128, %s1626, %s1614
        $region56: #{tpu_custom_call.1} parent=35 // pred_fallthru
          _
      $region36: #{tpu_custom_call.1} parent=5 // pred_fallthru
        _
      %p1632 = scmp.le.s32.totalorder 2, %s19
      // Predicated region
      $region57: #{tpu_custom_call.1} parent=5 // pred_check
        %p1633 = pneg %p1632
      $region58: #{tpu_custom_call.1} parent=5 // pred_check_branch
        %1635 = sbr.rel (%p1633) target = $region60
      $region59: #{tpu_custom_call.1} parent=5 // pred_region
        %s1636 = ssub.s32 %s19, 2
        // Predicated region
        $region61: #{tpu_custom_call.1} parent=59 // pred_check
          %p1637 = pneg %p156
        $region62: #{tpu_custom_call.1} parent=59 // pred_check_branch
          %1639 = sbr.rel (%p1637) target = $region64
        $region63: #{tpu_custom_call.1} parent=59 // pred_region
          %s1640 = sand.u32 %s141, 1
          %s1641 = scalar_lea.sflag [#allocation5], %s1640
          %s1642 = sand.u32 %s141, 1
          %s1643 = smul.addr %s1642, 8
          %s1644 = scalar_lea.vmem [#allocation9], %s1643
          %1645 = dma.done %s1641, 128
        $region64: #{tpu_custom_call.1} parent=59 // pred_fallthru
          _
      $region60: #{tpu_custom_call.1} parent=5 // pred_fallthru
        _
    $region6: #{tpu_custom_call.1} parent=1 // loop_footer
      %s23 = sadd.s32 1, %s19
    $region7: #{tpu_custom_call.1} parent=1 // loop_footer_branch
      %18 = sbr.rel target = $region3
    $region8: #{tpu_custom_call.1} parent=1 // loop_exit
      _
    %1646 = vsyncpa [#allocation4], 1
    %s1647 = scalar_lea.sflag [#allocation4], 1
    %1648 = vsyncpa %s1647, 1
    %1649 = vsyncpa [#allocation7], 1
    %s1650 = scalar_lea.sflag [#allocation7], 1
    %1651 = vsyncpa %s1650, 1
    %1652 = vsyncpa [#allocation5], 1
    %s1653 = scalar_lea.sflag [#allocation5], 1
    %1654 = vsyncpa %s1653, 1

</llo_original>
